<compile_context>
chip_gen: v7x
topology: tpu7x:2x2x1
jax: 0.10.0
libtpu: 0.0.40
codegen_flags: <defaults>
</compile_context>

<pallas_src>
import jax
import jax.numpy as jnp
from jax.experimental import pallas as pl
from jax.experimental.pallas import tpu as pltpu


EMBDS = [12, 100]                 # embedding widths from the module
LINEAR_SHAPES = [32, 128, 32]     # l1 / l2 / l3 widths
LIN = 300                         # linear_all1 width
LIN_PAD = 384                     # lane-aligned padded linear_all1 width (3*128)
OUT_PAD = 128                     # lane-dense padded width for the final dot
E_PAD = 128                       # padded embedding width (12 + 100 -> 128)
H2 = sum(LINEAR_SHAPES)           # 192
N1 = E_PAD + H2                   # 320 (stage-1 fused output width)


def _round_up(x, m):
    return (x + m - 1) // m * m


def _cdiv(a, b):
    return (a + b - 1) // b


# ----------------------------------------------------------------------------
# Kernel
# ----------------------------------------------------------------------------
def embed_net_kernel(ic_ref, cc_ref, in_ref, cn_ref, rn_ref,
                     w_ic_ref, w_cc_ref, w_in_ref, w_cn_ref, w_rn_ref, b1_ref,
                     w2e_ref, w3_ref, b3_ref, w4_ref, b4_ref, out_ref):
    bf16 = jnp.bfloat16
    f32 = jnp.float32

    # Stage 1 (fused): embedding pre-activations (lanes [0, E_PAD)) AND the
    # numeric + bias contribution of l1|l2|l3 (lanes [E_PAD, N1)) via 5 partial
    # bf16 dots accumulated in f32 (no concat / input padding round trip).
    p = (jnp.dot(ic_ref[...].astype(bf16), w_ic_ref[...], preferred_element_type=f32)
         + jnp.dot(cc_ref[...].astype(bf16), w_cc_ref[...], preferred_element_type=f32)
         + jnp.dot(in_ref[...].astype(bf16), w_in_ref[...], preferred_element_type=f32)
         + jnp.dot(cn_ref[...].astype(bf16), w_cn_ref[...], preferred_element_type=f32)
         + jnp.dot(rn_ref[...].astype(bf16), w_rn_ref[...], preferred_element_type=f32)
         + b1_ref[...])

    embeds = jnp.tanh(p[:, :E_PAD])        # [tb, 128], lane-aligned slice, f32
    num_part = p[:, E_PAD:]                # [tb, 192], numeric + bias part

    # Stage 2: embedding contribution of l1|l2 (block-diagonal), then ReLU.
    h2 = jnp.maximum(
        jnp.dot(embeds.astype(bf16), w2e_ref[...], preferred_element_type=f32)
        + num_part,
        0.0,
    )

    # Stage 3: linear_all1 (padded to 384 lanes) + ReLU.
    a1 = jnp.maximum(
        jnp.dot(h2.astype(bf16), w3_ref[...], preferred_element_type=f32)
        + b3_ref[...],
        0.0,
    )

    # Stage 4: linear_all2 — dot over 128 padded lanes for MXU regularity, but
    # store only the single real output column (128x smaller HBM writeback).
    o = jnp.dot(a1.astype(bf16), w4_ref[...], preferred_element_type=f32)
    out_ref[...] = o[:, :1] + b4_ref[...]


# ----------------------------------------------------------------------------
# Packing (done once in the wrapper, outside the kernel)
# ----------------------------------------------------------------------------
def pack_params(params, dims):
    """Build per-input block-diagonal / padded bf16 weight slabs (biases f32)."""
    n_ind_cat, n_ind_num, n_reg_num, n_car_cat, n_car_num = dims
    e1, e2 = EMBDS
    h1, h2c, h3 = LINEAR_SHAPES
    E = e1 + e2

    # split the concat-consuming weights along their input dimension
    w_ia, w_ib = params["w_i"][:e1], params["w_i"][e1:]
    w_ca, w_cb = params["w_c"][:e2], params["w_c"][e2:]

    def slab(rows, col0, block):
        w = jnp.zeros((rows, N1), jnp.float32)
        return w.at[:, col0:col0 + block.shape[1]].set(block)

    w_ic = slab(n_ind_cat, 0, params["w_ei"])                 # -> embeds_ind lanes
    w_cc = slab(n_car_cat, e1, params["w_ec"])                # -> embeds_car lanes
    w_in = slab(n_ind_num, E_PAD, w_ib)                       # -> l1 numeric part
    w_cn = slab(n_car_num, E_PAD + h1, w_cb)                  # -> l2 numeric part
    w_rn = slab(n_reg_num, E_PAD + h1 + h2c, params["w_r"])   # -> l3

    b1 = jnp.zeros((1, N1), jnp.float32)
    b1 = b1.at[:, 0:e1].set(params["b_ei"])
    b1 = b1.at[:, e1:E].set(params["b_ec"])
    b1 = b1.at[:, E_PAD:E_PAD + h1].set(params["b_i"])
    b1 = b1.at[:, E_PAD + h1:E_PAD + h1 + h2c].set(params["b_c"])
    b1 = b1.at[:, E_PAD + h1 + h2c:E_PAD + H2].set(params["b_r"])

    w2e = jnp.zeros((E_PAD, H2), jnp.float32)
    w2e = w2e.at[0:e1, 0:h1].set(w_ia)
    w2e = w2e.at[e1:E, h1:h1 + h2c].set(w_ca)

    w3 = jnp.zeros((H2, LIN_PAD), jnp.float32).at[:, :LIN].set(params["w_a1"])
    b3 = jnp.zeros((1, LIN_PAD), jnp.float32).at[:, :LIN].set(params["b_a1"])

    w4 = jnp.zeros((LIN_PAD, OUT_PAD), jnp.float32).at[:LIN, 0:1].set(params["w_a2"])
    b4 = params["b_a2"].reshape(1, 1).astype(jnp.float32)

    bf16 = jnp.bfloat16
    return dict(
        w_ic=w_ic.astype(bf16), w_cc=w_cc.astype(bf16), w_in=w_in.astype(bf16),
        w_cn=w_cn.astype(bf16), w_rn=w_rn.astype(bf16), b1=b1,
        w2e=w2e.astype(bf16), w3=w3.astype(bf16), b3=b3,
        w4=w4.astype(bf16), b4=b4,
    )


def _pad_batch(x, b_pad):
    b = x.shape[0]
    if b == b_pad:
        return x
    return jnp.pad(x, ((0, b_pad - b), (0, 0)))


# ----------------------------------------------------------------------------
# Wrapper
# ----------------------------------------------------------------------------
def embed_net_forward(inputs, packed, *, block_batch=1024):
    ind_cat, ind_num, reg_num, car_cat, car_num = inputs
    B = ind_cat.shape[0]

    # Batch tile: big to amortize per-step overhead, but keep >= ~4 grid steps
    # for large batches so v7x's 2 TensorCores both get work, and cap at ~1024
    # to stay well under v7x's 64 MiB physical VMEM.
    tb = min(_round_up(block_batch, 8), _round_up(B, 8))
    tb = max(8, min(tb, _round_up(_cdiv(B, 4), 8)))
    b_pad = _round_up(B, tb)
    grid = (b_pad // tb,)

    # 5 raw input tables (no concat / 128-wide padding round trip through HBM).
    ins = [_pad_batch(x, b_pad)
           for x in (ind_cat, car_cat, ind_num, car_num, reg_num)]

    weights = [packed[k] for k in ("w_ic", "w_cc", "w_in", "w_cn", "w_rn",
                                   "b1", "w2e", "w3", "b3", "w4", "b4")]

    def tile_spec(x):
        # block last dim == full array dim -> legal under the (8,128) rule
        return pl.BlockSpec((tb, x.shape[1]), lambda i: (i, 0))

    def const_spec(a):
        # full-array block, resident across all batch tiles (constant index map)
        return pl.BlockSpec(a.shape, lambda i: (0, 0))

    out = pl.pallas_call(
        embed_net_kernel,
        out_shape=jax.ShapeDtypeStruct((b_pad, 1), jnp.float32),
        grid=grid,
        in_specs=[tile_spec(x) for x in ins] + [const_spec(a) for a in weights],
        out_specs=pl.BlockSpec((tb, 1), lambda i: (i, 0)),
        compiler_params=pltpu.CompilerParams(
            dimension_semantics=("parallel",),   # shard batch tiles across TCs on v7x
            vmem_limit_bytes=32 << 20,
        ),
    )(*ins, *weights)

    return out[:B]


# ----------------------------------------------------------------------------
# Params (PyTorch-Linear-style init, weights stored transposed [in, out])
# ----------------------------------------------------------------------------
def make_params(key, dims):
    n_ind_cat, n_ind_num, n_reg_num, n_car_cat, n_car_num = dims

    def linear(key, fan_in, fan_out):
        k1, k2 = jax.random.split(key)
        bound = 1.0 / jnp.sqrt(fan_in)
        w = jax.random.uniform(k1, (fan_in, fan_out), jnp.float32, -bound, bound)
        b = jax.random.uniform(k2, (1, fan_out), jnp.float32, -bound, bound)
        return w, b

    keys = jax.random.split(key, 7)
    w_ei, b_ei = linear(keys[0], n_ind_cat, EMBDS[0])
    w_ec, b_ec = linear(keys[1], n_car_cat, EMBDS[1])
    w_i, b_i = linear(keys[2], EMBDS[0] + n_ind_num, LINEAR_SHAPES[0])
    w_c, b_c = linear(keys[3], EMBDS[1] + n_car_num, LINEAR_SHAPES[1])
    w_r, b_r = linear(keys[4], n_reg_num, LINEAR_SHAPES[2])
    w_a1, b_a1 = linear(keys[5], sum(LINEAR_SHAPES), LIN)
    w_a2, b_a2 = linear(keys[6], LIN, 1)

    return dict(
        w_ei=w_ei, b_ei=b_ei, w_ec=w_ec, b_ec=b_ec,
        w_i=w_i, b_i=b_i, w_c=w_c, b_c=b_c, w_r=w_r, b_r=b_r,
        w_a1=w_a1, b_a1=b_a1, w_a2=w_a2, b_a2=b_a2,
    )


def reference_forward(inputs, params):
    """Plain-JAX f32 reference mirroring the PyTorch forward (eval mode)."""
    ind_cat, ind_num, reg_num, car_cat, car_num = inputs
    e_i = jnp.tanh(ind_cat @ params["w_ei"] + params["b_ei"])
    e_c = jnp.tanh(car_cat @ params["w_ec"] + params["b_ec"])
    l1 = jax.nn.relu(jnp.concatenate([e_i, ind_num], 1) @ params["w_i"] + params["b_i"])
    l2 = jax.nn.relu(jnp.concatenate([e_c, car_num], 1) @ params["w_c"] + params["b_c"])
    l3 = jax.nn.relu(reg_num @ params["w_r"] + params["b_r"])
    a1 = jax.nn.relu(
        jnp.concatenate([l1, l2, l3], 1) @ params["w_a1"] + params["b_a1"]
    )
    return a1 @ params["w_a2"] + params["b_a2"]


if __name__ == "__main__":
    # Small synthetic column counts consistent with the module's forward.
    B = 8
    n_ind_cat, n_ind_num, n_reg_num, n_car_cat, n_car_num = 16, 8, 8, 16, 8
    dims = (n_ind_cat, n_ind_num, n_reg_num, n_car_cat, n_car_num)

    key = jax.random.PRNGKey(0)
    k_in, k_p = jax.random.split(key)
    ks = jax.random.split(k_in, 5)
    inputs = (
        jax.random.normal(ks[0], (B, n_ind_cat), jnp.float32),   # ind_cols_cat
        jax.random.normal(ks[1], (B, n_ind_num), jnp.float32),   # ind_cols_num
        jax.random.normal(ks[2], (B, n_reg_num), jnp.float32),   # reg_cols_num
        jax.random.normal(ks[3], (B, n_car_cat), jnp.float32),   # car_cols_cat
        jax.random.normal(ks[4], (B, n_car_num), jnp.float32),   # car_cols_num
    )
    params = make_params(k_p, dims)
    packed = pack_params(params, dims)

    out = embed_net_forward(inputs, packed)
    out = jax.block_until_ready(out)

    ref = reference_forward(inputs, params)
    assert out.shape == (B, 1)
    # bf16 MXU operands (f32 accumulation) -> relaxed parity vs the f32 reference.
    assert jnp.allclose(out, ref, atol=5e-2, rtol=5e-2), (
        float(jnp.max(jnp.abs(out - ref))))

    print("KERNEL_OK")
</pallas_src>

<mosaic_0001>
module attributes {stable_mosaic.version = 11 : i64} {
  func.func @embed_net_kernel(%arg0: i32, %arg1: memref<8x16xf32, #tpu.memory_space<vmem>>, %arg2: memref<8x16xf32, #tpu.memory_space<vmem>>, %arg3: memref<8x8xf32, #tpu.memory_space<vmem>>, %arg4: memref<8x8xf32, #tpu.memory_space<vmem>>, %arg5: memref<8x8xf32, #tpu.memory_space<vmem>>, %arg6: memref<16x320xbf16, #tpu.memory_space<vmem>>, %arg7: memref<16x320xbf16, #tpu.memory_space<vmem>>, %arg8: memref<8x320xbf16, #tpu.memory_space<vmem>>, %arg9: memref<8x320xbf16, #tpu.memory_space<vmem>>, %arg10: memref<8x320xbf16, #tpu.memory_space<vmem>>, %arg11: memref<1x320xf32, #tpu.memory_space<vmem>>, %arg12: memref<128x192xbf16, #tpu.memory_space<vmem>>, %arg13: memref<192x384xbf16, #tpu.memory_space<vmem>>, %arg14: memref<1x384xf32, #tpu.memory_space<vmem>>, %arg15: memref<384x128xbf16, #tpu.memory_space<vmem>>, %arg16: memref<1x1xf32, #tpu.memory_space<vmem>>, %arg17: memref<8x1xf32, #tpu.memory_space<vmem>>) attributes {dimension_semantics = [#tpu.dimension_semantics<parallel>], iteration_bounds = array<i64: 1>, scalar_prefetch = 0 : i64, scratch_operands = 0 : i64, tpu.core_type = #tpu.core_type<tc>, window_params = [{transform_indices = @transform_0, window_bounds = array<i64: 8, 16>}, {transform_indices = @transform_1, window_bounds = array<i64: 8, 16>}, {transform_indices = @transform_2, window_bounds = array<i64: 8, 8>}, {transform_indices = @transform_3, window_bounds = array<i64: 8, 8>}, {transform_indices = @transform_4, window_bounds = array<i64: 8, 8>}, {pipeline_mode = #tpu.pipeline_mode<synchronous>, transform_indices = @transform_5, window_bounds = array<i64: 16, 320>}, {pipeline_mode = #tpu.pipeline_mode<synchronous>, transform_indices = @transform_6, window_bounds = array<i64: 16, 320>}, {pipeline_mode = #tpu.pipeline_mode<synchronous>, transform_indices = @transform_7, window_bounds = array<i64: 8, 320>}, {pipeline_mode = #tpu.pipeline_mode<synchronous>, transform_indices = @transform_8, window_bounds = array<i64: 8, 320>}, {pipeline_mode = #tpu.pipeline_mode<synchronous>, transform_indices = @transform_9, window_bounds = array<i64: 8, 320>}, {pipeline_mode = #tpu.pipeline_mode<synchronous>, transform_indices = @transform_10, window_bounds = array<i64: 1, 320>}, {pipeline_mode = #tpu.pipeline_mode<synchronous>, transform_indices = @transform_11, window_bounds = array<i64: 128, 192>}, {pipeline_mode = #tpu.pipeline_mode<synchronous>, transform_indices = @transform_12, window_bounds = array<i64: 192, 384>}, {pipeline_mode = #tpu.pipeline_mode<synchronous>, transform_indices = @transform_13, window_bounds = array<i64: 1, 384>}, {pipeline_mode = #tpu.pipeline_mode<synchronous>, transform_indices = @transform_14, window_bounds = array<i64: 384, 128>}, {pipeline_mode = #tpu.pipeline_mode<synchronous>, transform_indices = @transform_15, window_bounds = array<i64: 1, 1>}, {transform_indices = @transform_16, window_bounds = array<i64: 8, 1>}]} {
    %c0 = arith.constant 0 : index
    %c0_0 = arith.constant 0 : index
    %0 = vector.load %arg1[%c0, %c0_0] : memref<8x16xf32, #tpu.memory_space<vmem>>, vector<8x16xf32>
    %1 = arith.truncf %0 : vector<8x16xf32> to vector<8x16xbf16>
    %c0_1 = arith.constant 0 : index
    %c0_2 = arith.constant 0 : index
    %2 = vector.load %arg6[%c0_1, %c0_2] : memref<16x320xbf16, #tpu.memory_space<vmem>>, vector<16x320xbf16>
    %cst = arith.constant dense<0.000000e+00> : vector<8x320xf32>
    %3 = tpu.matmul %1, %2, %cst {dimension_numbers = #tpu.dot_dimension_numbers<[1], [0], [0], [1], [0, 0, 1, 1], [], []>} : vector<8x16xbf16>, vector<16x320xbf16>, vector<8x320xf32> -> vector<8x320xf32>
    %c0_3 = arith.constant 0 : index
    %c0_4 = arith.constant 0 : index
    %4 = vector.load %arg2[%c0_3, %c0_4] : memref<8x16xf32, #tpu.memory_space<vmem>>, vector<8x16xf32>
    %5 = arith.truncf %4 : vector<8x16xf32> to vector<8x16xbf16>
    %c0_5 = arith.constant 0 : index
    %c0_6 = arith.constant 0 : index
    %6 = vector.load %arg7[%c0_5, %c0_6] : memref<16x320xbf16, #tpu.memory_space<vmem>>, vector<16x320xbf16>
    %cst_7 = arith.constant dense<0.000000e+00> : vector<8x320xf32>
    %7 = tpu.matmul %5, %6, %cst_7 {dimension_numbers = #tpu.dot_dimension_numbers<[1], [0], [0], [1], [0, 0, 1, 1], [], []>} : vector<8x16xbf16>, vector<16x320xbf16>, vector<8x320xf32> -> vector<8x320xf32>
    %8 = arith.addf %3, %7 : vector<8x320xf32>
    %c0_8 = arith.constant 0 : index
    %c0_9 = arith.constant 0 : index
    %9 = vector.load %arg3[%c0_8, %c0_9] : memref<8x8xf32, #tpu.memory_space<vmem>>, vector<8x8xf32>
    %10 = arith.truncf %9 : vector<8x8xf32> to vector<8x8xbf16>
    %c0_10 = arith.constant 0 : index
    %c0_11 = arith.constant 0 : index
    %11 = vector.load %arg8[%c0_10, %c0_11] : memref<8x320xbf16, #tpu.memory_space<vmem>>, vector<8x320xbf16>
    %cst_12 = arith.constant dense<0.000000e+00> : vector<8x320xf32>
    %12 = tpu.matmul %10, %11, %cst_12 {dimension_numbers = #tpu.dot_dimension_numbers<[1], [0], [0], [1], [0, 0, 1, 1], [], []>} : vector<8x8xbf16>, vector<8x320xbf16>, vector<8x320xf32> -> vector<8x320xf32>
    %13 = arith.addf %8, %12 : vector<8x320xf32>
    %c0_13 = arith.constant 0 : index
    %c0_14 = arith.constant 0 : index
    %14 = vector.load %arg4[%c0_13, %c0_14] : memref<8x8xf32, #tpu.memory_space<vmem>>, vector<8x8xf32>
    %15 = arith.truncf %14 : vector<8x8xf32> to vector<8x8xbf16>
    %c0_15 = arith.constant 0 : index
    %c0_16 = arith.constant 0 : index
    %16 = vector.load %arg9[%c0_15, %c0_16] : memref<8x320xbf16, #tpu.memory_space<vmem>>, vector<8x320xbf16>
    %cst_17 = arith.constant dense<0.000000e+00> : vector<8x320xf32>
    %17 = tpu.matmul %15, %16, %cst_17 {dimension_numbers = #tpu.dot_dimension_numbers<[1], [0], [0], [1], [0, 0, 1, 1], [], []>} : vector<8x8xbf16>, vector<8x320xbf16>, vector<8x320xf32> -> vector<8x320xf32>
    %18 = arith.addf %13, %17 : vector<8x320xf32>
    %c0_18 = arith.constant 0 : index
    %c0_19 = arith.constant 0 : index
    %19 = vector.load %arg5[%c0_18, %c0_19] : memref<8x8xf32, #tpu.memory_space<vmem>>, vector<8x8xf32>
    %20 = arith.truncf %19 : vector<8x8xf32> to vector<8x8xbf16>
    %c0_20 = arith.constant 0 : index
    %c0_21 = arith.constant 0 : index
    %21 = vector.load %arg10[%c0_20, %c0_21] : memref<8x320xbf16, #tpu.memory_space<vmem>>, vector<8x320xbf16>
    %cst_22 = arith.constant dense<0.000000e+00> : vector<8x320xf32>
    %22 = tpu.matmul %20, %21, %cst_22 {dimension_numbers = #tpu.dot_dimension_numbers<[1], [0], [0], [1], [0, 0, 1, 1], [], []>} : vector<8x8xbf16>, vector<8x320xbf16>, vector<8x320xf32> -> vector<8x320xf32>
    %23 = arith.addf %18, %22 : vector<8x320xf32>
    %c0_23 = arith.constant 0 : index
    %c0_24 = arith.constant 0 : index
    %24 = vector.load %arg11[%c0_23, %c0_24] : memref<1x320xf32, #tpu.memory_space<vmem>>, vector<1x320xf32>
    %25 = vector.broadcast %24 : vector<1x320xf32> to vector<8x320xf32>
    %26 = arith.addf %23, %25 : vector<8x320xf32>
    %27 = vector.extract_strided_slice %26 {offsets = [0, 0], sizes = [8, 128], strides = [1, 1]} : vector<8x320xf32> to vector<8x128xf32>
    %28 = math.tanh %27 : vector<8x128xf32>
    %29 = vector.extract_strided_slice %26 {offsets = [0, 128], sizes = [8, 192], strides = [1, 1]} : vector<8x320xf32> to vector<8x192xf32>
    %30 = arith.truncf %28 : vector<8x128xf32> to vector<8x128xbf16>
    %c0_25 = arith.constant 0 : index
    %c0_26 = arith.constant 0 : index
    %31 = vector.load %arg12[%c0_25, %c0_26] : memref<128x192xbf16, #tpu.memory_space<vmem>>, vector<128x192xbf16>
    %cst_27 = arith.constant dense<0.000000e+00> : vector<8x192xf32>
    %32 = tpu.matmul %30, %31, %cst_27 {dimension_numbers = #tpu.dot_dimension_numbers<[1], [0], [0], [1], [0, 0, 1, 1], [], []>} : vector<8x128xbf16>, vector<128x192xbf16>, vector<8x192xf32> -> vector<8x192xf32>
    %33 = arith.addf %32, %29 : vector<8x192xf32>
    %cst_28 = arith.constant 0.000000e+00 : f32
    %34 = vector.broadcast %cst_28 : f32 to vector<8x192xf32>
    %35 = arith.maximumf %33, %34 : vector<8x192xf32>
    %36 = arith.truncf %35 : vector<8x192xf32> to vector<8x192xbf16>
    %c0_29 = arith.constant 0 : index
    %c0_30 = arith.constant 0 : index
    %37 = vector.load %arg13[%c0_29, %c0_30] : memref<192x384xbf16, #tpu.memory_space<vmem>>, vector<192x384xbf16>
    %cst_31 = arith.constant dense<0.000000e+00> : vector<8x384xf32>
    %38 = tpu.matmul %36, %37, %cst_31 {dimension_numbers = #tpu.dot_dimension_numbers<[1], [0], [0], [1], [0, 0, 1, 1], [], []>} : vector<8x192xbf16>, vector<192x384xbf16>, vector<8x384xf32> -> vector<8x384xf32>
    %c0_32 = arith.constant 0 : index
    %c0_33 = arith.constant 0 : index
    %39 = vector.load %arg14[%c0_32, %c0_33] : memref<1x384xf32, #tpu.memory_space<vmem>>, vector<1x384xf32>
    %40 = vector.broadcast %39 : vector<1x384xf32> to vector<8x384xf32>
    %41 = arith.addf %38, %40 : vector<8x384xf32>
    %cst_34 = arith.constant 0.000000e+00 : f32
    %42 = vector.broadcast %cst_34 : f32 to vector<8x384xf32>
    %43 = arith.maximumf %41, %42 : vector<8x384xf32>
    %44 = arith.truncf %43 : vector<8x384xf32> to vector<8x384xbf16>
    %c0_35 = arith.constant 0 : index
    %c0_36 = arith.constant 0 : index
    %45 = vector.load %arg15[%c0_35, %c0_36] : memref<384x128xbf16, #tpu.memory_space<vmem>>, vector<384x128xbf16>
    %cst_37 = arith.constant dense<0.000000e+00> : vector<8x128xf32>
    %46 = tpu.matmul %44, %45, %cst_37 {dimension_numbers = #tpu.dot_dimension_numbers<[1], [0], [0], [1], [0, 0, 1, 1], [], []>} : vector<8x384xbf16>, vector<384x128xbf16>, vector<8x128xf32> -> vector<8x128xf32>
    %47 = vector.extract_strided_slice %46 {offsets = [0, 0], sizes = [8, 1], strides = [1, 1]} : vector<8x128xf32> to vector<8x1xf32>
    %c0_38 = arith.constant 0 : index
    %c0_39 = arith.constant 0 : index
    %48 = vector.load %arg16[%c0_38, %c0_39] : memref<1x1xf32, #tpu.memory_space<vmem>>, vector<1x1xf32>
    %49 = vector.broadcast %48 : vector<1x1xf32> to vector<8x1xf32>
    %50 = arith.addf %47, %49 : vector<8x1xf32>
    %c0_40 = arith.constant 0 : index
    %c0_41 = arith.constant 0 : index
    %51 = vector.load %arg17[%c0_40, %c0_41] : memref<8x1xf32, #tpu.memory_space<vmem>>, vector<8x1xf32>
    tpu.vector_store %arg17[%c0_40, %c0_41], %50 {strides = array<i32>} : memref<8x1xf32, #tpu.memory_space<vmem>>, vector<8x1xf32>,
    return
  }
  func.func @transform_0(%arg0: i32) -> (i32, i32) {
    %c0_i32 = arith.constant 0 : i32
    %c0_i32_0 = arith.constant 0 : i32
    return %arg0, %c0_i32 : i32, i32
  }
  func.func @transform_1(%arg0: i32) -> (i32, i32) {
    %c0_i32 = arith.constant 0 : i32
    %c0_i32_0 = arith.constant 0 : i32
    return %arg0, %c0_i32 : i32, i32
  }
  func.func @transform_2(%arg0: i32) -> (i32, i32) {
    %c0_i32 = arith.constant 0 : i32
    %c0_i32_0 = arith.constant 0 : i32
    return %arg0, %c0_i32 : i32, i32
  }
  func.func @transform_3(%arg0: i32) -> (i32, i32) {
    %c0_i32 = arith.constant 0 : i32
    %c0_i32_0 = arith.constant 0 : i32
    return %arg0, %c0_i32 : i32, i32
  }
  func.func @transform_4(%arg0: i32) -> (i32, i32) {
    %c0_i32 = arith.constant 0 : i32
    %c0_i32_0 = arith.constant 0 : i32
    return %arg0, %c0_i32 : i32, i32
  }
  func.func @transform_5(%arg0: i32) -> (i32, i32) {
    %c0_i32 = arith.constant 0 : i32
    %c0_i32_0 = arith.constant 0 : i32
    %c0_i32_1 = arith.constant 0 : i32
    return %c0_i32, %c0_i32_0 : i32, i32
  }
  func.func @transform_6(%arg0: i32) -> (i32, i32) {
    %c0_i32 = arith.constant 0 : i32
    %c0_i32_0 = arith.constant 0 : i32
    %c0_i32_1 = arith.constant 0 : i32
    return %c0_i32, %c0_i32_0 : i32, i32
  }
  func.func @transform_7(%arg0: i32) -> (i32, i32) {
    %c0_i32 = arith.constant 0 : i32
    %c0_i32_0 = arith.constant 0 : i32
    %c0_i32_1 = arith.constant 0 : i32
    return %c0_i32, %c0_i32_0 : i32, i32
  }
  func.func @transform_8(%arg0: i32) -> (i32, i32) {
    %c0_i32 = arith.constant 0 : i32
    %c0_i32_0 = arith.constant 0 : i32
    %c0_i32_1 = arith.constant 0 : i32
    return %c0_i32, %c0_i32_0 : i32, i32
  }
  func.func @transform_9(%arg0: i32) -> (i32, i32) {
    %c0_i32 = arith.constant 0 : i32
    %c0_i32_0 = arith.constant 0 : i32
    %c0_i32_1 = arith.constant 0 : i32
    return %c0_i32, %c0_i32_0 : i32, i32
  }
  func.func @transform_10(%arg0: i32) -> (i32, i32) {
    %c0_i32 = arith.constant 0 : i32
    %c0_i32_0 = arith.constant 0 : i32
    %c0_i32_1 = arith.constant 0 : i32
    return %c0_i32, %c0_i32_0 : i32, i32
  }
  func.func @transform_11(%arg0: i32) -> (i32, i32) {
    %c0_i32 = arith.constant 0 : i32
    %c0_i32_0 = arith.constant 0 : i32
    %c0_i32_1 = arith.constant 0 : i32
    return %c0_i32, %c0_i32_0 : i32, i32
  }
  func.func @transform_12(%arg0: i32) -> (i32, i32) {
    %c0_i32 = arith.constant 0 : i32
    %c0_i32_0 = arith.constant 0 : i32
    %c0_i32_1 = arith.constant 0 : i32
    return %c0_i32, %c0_i32_0 : i32, i32
  }
  func.func @transform_13(%arg0: i32) -> (i32, i32) {
    %c0_i32 = arith.constant 0 : i32
    %c0_i32_0 = arith.constant 0 : i32
    %c0_i32_1 = arith.constant 0 : i32
    return %c0_i32, %c0_i32_0 : i32, i32
  }
  func.func @transform_14(%arg0: i32) -> (i32, i32) {
    %c0_i32 = arith.constant 0 : i32
    %c0_i32_0 = arith.constant 0 : i32
    %c0_i32_1 = arith.constant 0 : i32
    return %c0_i32, %c0_i32_0 : i32, i32
  }
  func.func @transform_15(%arg0: i32) -> (i32, i32) {
    %c0_i32 = arith.constant 0 : i32
    %c0_i32_0 = arith.constant 0 : i32
    %c0_i32_1 = arith.constant 0 : i32
    return %c0_i32, %c0_i32_0 : i32, i32
  }
  func.func @transform_16(%arg0: i32) -> (i32, i32) {
    %c0_i32 = arith.constant 0 : i32
    %c0_i32_0 = arith.constant 0 : i32
    return %arg0, %c0_i32 : i32, i32
  }
}

</mosaic_0001>

<llo_original>
// kernel: tpu_custom_call.1
$region0: #{tpu_custom_call.1}
  #allocation0 [shape = 'u32[]', space=smem, size = 0x4, offset = 0x4, fixed_abs, tag = 'smem constant byte address 0x4 - core index']
  #allocation1 [shape = 'u32[144,128]{1,0:T(1,128)}', space=vmem, size = 0x12000, scoped, tag = 'internal scratch']
  #allocation2 [shape = 'f32[1,1]{1,0:T(1,128)S(1)}', space=vmem, size = 0x200, scoped, tag = 'scoped memory for tpu_custom_call.1']
  %s0 = inlined_call_operand.hbm [shape: f32[8,16], index: 0, kind: input, shape index: {}]
  %s1 = inlined_call_operand.hbm [shape: f32[8,16], index: 1, kind: input, shape index: {}]
  %s2 = inlined_call_operand.hbm [shape: f32[8,8], index: 2, kind: input, shape index: {}]
  %s3 = inlined_call_operand.hbm [shape: f32[8,8], index: 3, kind: input, shape index: {}]
  %s4 = inlined_call_operand.hbm [shape: f32[8,8], index: 4, kind: input, shape index: {}]
  %s5 = inlined_call_operand.vmem [shape: bf16[16,320], index: 5, kind: input, shape index: {}]
  %s6 = inlined_call_operand.vmem [shape: bf16[16,320], index: 6, kind: input, shape index: {}]
  %s7 = inlined_call_operand.vmem [shape: bf16[8,320], index: 7, kind: input, shape index: {}]
  %s8 = inlined_call_operand.vmem [shape: bf16[8,320], index: 8, kind: input, shape index: {}]
  %s9 = inlined_call_operand.vmem [shape: bf16[8,320], index: 9, kind: input, shape index: {}]
  %s10 = inlined_call_operand.vmem [shape: f32[1,320], index: 10, kind: input, shape index: {}]
  %s11 = inlined_call_operand.vmem [shape: bf16[128,192], index: 11, kind: input, shape index: {}]
  %s12 = inlined_call_operand.hbm [shape: bf16[192,384], index: 12, kind: input, shape index: {}]
  %s13 = inlined_call_operand.hbm [shape: f32[1,384], index: 13, kind: input, shape index: {}]
  %s14 = inlined_call_operand.vmem [shape: bf16[384,128], index: 14, kind: input, shape index: {}]
  %s15 = inlined_call_operand.<no memory space> [shape: f32[1,1], index: 15, kind: input, shape index: {}]
  %s16 = inlined_call_operand.vmem [shape: f32[8,1], index: 16, kind: output, shape index: {}]
  %s17 = sld [smem:[#allocation0]]
  $region102: #{tpu_custom_call.1} parent=0
    _
  %s19 = ssub.s32 1, %s17
  %s20 = scalar_select 0, %s19, %s17
  %v21 = vstv %s15
  %22 = vst [vmem:[#allocation2] sm:$0x1] %v21
  $region1: #{tpu_custom_call.1} parent=0
    #allocation3 [shape = 'u8[4096]{0}', space=vmem, size = 0x1000, scoped, tag = 'input window, operand 0, single buffered']
    #allocation4 [shape = 's32[1]{0}', space=sflag, size = 0x4, scoped, tag = 'scoped memory for tpu_custom_call.1']
    #allocation5 [shape = 'u8[4096]{0}', space=vmem, size = 0x1000, scoped, tag = 'input window, operand 1, single buffered']
    #allocation6 [shape = 's32[1]{0}', space=sflag, size = 0x4, scoped, tag = 'scoped memory for tpu_custom_call.1']
    #allocation7 [shape = 'u8[4096]{0}', space=vmem, size = 0x1000, scoped, tag = 'input window, operand 2, single buffered']
    #allocation8 [shape = 'u8[4096]{0}', space=vmem, size = 0x1000, scoped, tag = 'input window, operand 3, single buffered']
    #allocation9 [shape = 's32[1]{0}', space=sflag, size = 0x4, scoped, tag = 'scoped memory for tpu_custom_call.1']
    #allocation10 [shape = 'u8[4096]{0}', space=vmem, size = 0x1000, scoped, tag = 'input window, operand 4, single buffered']
    #allocation11 [shape = 'u8[147456]{0}', space=vmem, size = 0x24000, scoped, tag = 'input window, operand 12, single buffered']
    #allocation12 [shape = 's32[1]{0}', space=sflag, size = 0x4, scoped, tag = 'scoped memory for tpu_custom_call.1']
    #allocation13 [shape = 'u8[1536]{0}', space=vmem, size = 0x800, scoped, tag = 'input window, operand 13, single buffered']
    %23 = vsyncpa [#allocation4], 0
    %24 = vsyncpa [#allocation6], 0
    %25 = vsyncpa [#allocation9], 0
    %26 = vsyncpa [#allocation12], 0
    // Predicated region
    $region2: #{tpu_custom_call.1} parent=1 // pred_check
      _
    $region3: #{tpu_custom_call.1} parent=1 // pred_check_branch
      %28 = sbr.rel (0) target = $region5
    $region4: #{tpu_custom_call.1} parent=1 // pred_region
      %s30 = ssub.s32 128, 128
      %31 = vsyncadd [#allocation4], %s30
      %s33 = sshll.u32 [#allocation3], 4
      %s34 = int_to_ptr.vmem [resolvable:$true] %s33
      %36 = dma.hbm_to_vmem [thread:$0]  %s0, 128, %s34, [#allocation4]
    $region5: #{tpu_custom_call.1} parent=1 // pred_fallthru
      _
    // Predicated region
    $region6: #{tpu_custom_call.1} parent=1 // pred_check
      _
    $region7: #{tpu_custom_call.1} parent=1 // pred_check_branch
      %38 = sbr.rel (0) target = $region9
    $region8: #{tpu_custom_call.1} parent=1 // pred_region
      %s40 = ssub.s32 128, 128
      %41 = vsyncadd [#allocation6], %s40
      %s43 = sshll.u32 [#allocation5], 4
      %s44 = int_to_ptr.vmem [resolvable:$true] %s43
      %46 = dma.hbm_to_vmem [thread:$0]  %s1, 128, %s44, [#allocation6]
    $region9: #{tpu_custom_call.1} parent=1 // pred_fallthru
      _
    // Predicated region
    $region10: #{tpu_custom_call.1} parent=1 // pred_check
      _
    $region11: #{tpu_custom_call.1} parent=1 // pred_check_branch
      %48 = sbr.rel (0) target = $region13
    $region12: #{tpu_custom_call.1} parent=1 // pred_region
      %s50 = ssub.s32 128, 128
      %51 = vsyncadd [#allocation6], %s50
      %s53 = sshll.u32 [#allocation7], 4
      %s54 = int_to_ptr.vmem [resolvable:$true] %s53
      %56 = dma.hbm_to_vmem [thread:$0]  %s2, 128, %s54, [#allocation6]
    $region13: #{tpu_custom_call.1} parent=1 // pred_fallthru
      _
    // Predicated region
    $region14: #{tpu_custom_call.1} parent=1 // pred_check
      _
    $region15: #{tpu_custom_call.1} parent=1 // pred_check_branch
      %58 = sbr.rel (0) target = $region17
    $region16: #{tpu_custom_call.1} parent=1 // pred_region
      %s60 = ssub.s32 128, 128
      %61 = vsyncadd [#allocation9], %s60
      %s63 = sshll.u32 [#allocation8], 4
      %s64 = int_to_ptr.vmem [resolvable:$true] %s63
      %66 = dma.hbm_to_vmem [thread:$0]  %s3, 128, %s64, [#allocation9]
    $region17: #{tpu_custom_call.1} parent=1 // pred_fallthru
      _
    // Predicated region
    $region18: #{tpu_custom_call.1} parent=1 // pred_check
      _
    $region19: #{tpu_custom_call.1} parent=1 // pred_check_branch
      %68 = sbr.rel (0) target = $region21
    $region20: #{tpu_custom_call.1} parent=1 // pred_region
      %s70 = ssub.s32 128, 128
      %71 = vsyncadd [#allocation9], %s70
      %s73 = sshll.u32 [#allocation10], 4
      %s74 = int_to_ptr.vmem [resolvable:$true] %s73
      %76 = dma.hbm_to_vmem [thread:$0]  %s4, 128, %s74, [#allocation9]
    $region21: #{tpu_custom_call.1} parent=1 // pred_fallthru
      _
    // Predicated region
    $region22: #{tpu_custom_call.1} parent=1 // pred_check
      _
    $region23: #{tpu_custom_call.1} parent=1 // pred_check_branch
      %78 = sbr.rel (0) target = $region25
    $region24: #{tpu_custom_call.1} parent=1 // pred_region
      _
    $region25: #{tpu_custom_call.1} parent=1 // pred_fallthru
      _
    // Predicated region
    $region26: #{tpu_custom_call.1} parent=1 // pred_check
      _
    $region27: #{tpu_custom_call.1} parent=1 // pred_check_branch
      %80 = sbr.rel (0) target = $region29
    $region28: #{tpu_custom_call.1} parent=1 // pred_region
      _
    $region29: #{tpu_custom_call.1} parent=1 // pred_fallthru
      _
    // Predicated region
    $region30: #{tpu_custom_call.1} parent=1 // pred_check
      _
    $region31: #{tpu_custom_call.1} parent=1 // pred_check_branch
      %82 = sbr.rel (0) target = $region33
    $region32: #{tpu_custom_call.1} parent=1 // pred_region
      _
    $region33: #{tpu_custom_call.1} parent=1 // pred_fallthru
      _
    // Predicated region
    $region34: #{tpu_custom_call.1} parent=1 // pred_check
      _
    $region35: #{tpu_custom_call.1} parent=1 // pred_check_branch
      %84 = sbr.rel (0) target = $region37
    $region36: #{tpu_custom_call.1} parent=1 // pred_region
      _
    $region37: #{tpu_custom_call.1} parent=1 // pred_fallthru
      _
    // Predicated region
    $region38: #{tpu_custom_call.1} parent=1 // pred_check
      _
    $region39: #{tpu_custom_call.1} parent=1 // pred_check_branch
      %86 = sbr.rel (0) target = $region41
    $region40: #{tpu_custom_call.1} parent=1 // pred_region
      _
    $region41: #{tpu_custom_call.1} parent=1 // pred_fallthru
      _
    // Predicated region
    $region42: #{tpu_custom_call.1} parent=1 // pred_check
      _
    $region43: #{tpu_custom_call.1} parent=1 // pred_check_branch
      %88 = sbr.rel (0) target = $region45
    $region44: #{tpu_custom_call.1} parent=1 // pred_region
      _
    $region45: #{tpu_custom_call.1} parent=1 // pred_fallthru
      _
    // Predicated region
    $region46: #{tpu_custom_call.1} parent=1 // pred_check
      _
    $region47: #{tpu_custom_call.1} parent=1 // pred_check_branch
      %90 = sbr.rel (0) target = $region49
    $region48: #{tpu_custom_call.1} parent=1 // pred_region
      _
    $region49: #{tpu_custom_call.1} parent=1 // pred_fallthru
      _
    // Predicated region
    $region50: #{tpu_custom_call.1} parent=1 // pred_check
      _
    $region51: #{tpu_custom_call.1} parent=1 // pred_check_branch
      %92 = sbr.rel (0) target = $region53
    $region52: #{tpu_custom_call.1} parent=1 // pred_region
      %s94 = ssub.s32 4608, 4608
      %95 = vsyncadd [#allocation12], %s94
      %s96 = sshll.u32 [#allocation11], 4
      %s97 = int_to_ptr.vmem [resolvable:$true] %s96
      %102 = dma.hbm_to_vmem [thread:$0]  %s12, 4608, %s97, [#allocation12], 192, 192, 12
    $region53: #{tpu_custom_call.1} parent=1 // pred_fallthru
      _
    // Predicated region
    $region54: #{tpu_custom_call.1} parent=1 // pred_check
      _
    $region55: #{tpu_custom_call.1} parent=1 // pred_check_branch
      %104 = sbr.rel (0) target = $region57
    $region56: #{tpu_custom_call.1} parent=1 // pred_region
      %s106 = ssub.s32 48, 48
      %107 = vsyncadd [#allocation12], %s106
      %s109 = sshll.u32 [#allocation13], 4
      %s110 = int_to_ptr.vmem [resolvable:$true] %s109
      %112 = dma.hbm_to_vmem [thread:$0]  %s13, 48, %s110, [#allocation12]
    $region57: #{tpu_custom_call.1} parent=1 // pred_fallthru
      _
    // Predicated region
    $region58: #{tpu_custom_call.1} parent=1 // pred_check
      _
    $region59: #{tpu_custom_call.1} parent=1 // pred_check_branch
      %114 = sbr.rel (0) target = $region61
    $region60: #{tpu_custom_call.1} parent=1 // pred_region
      _
    $region61: #{tpu_custom_call.1} parent=1 // pred_fallthru
      _
    // Predicated region
    $region62: #{tpu_custom_call.1} parent=1 // pred_check
      _
    $region63: #{tpu_custom_call.1} parent=1 // pred_check_branch
      %116 = sbr.rel (0) target = $region65
    $region64: #{tpu_custom_call.1} parent=1 // pred_region
      _
    $region65: #{tpu_custom_call.1} parent=1 // pred_fallthru
      _
    // Predicated region
    $region66: #{tpu_custom_call.1} parent=1 // pred_check
      _
    $region67: #{tpu_custom_call.1} parent=1 // pred_check_branch
      %118 = sbr.rel (0) target = $region69
    $region68: #{tpu_custom_call.1} parent=1 // pred_region
      %119 = dma.done [#allocation4], 128
    $region69: #{tpu_custom_call.1} parent=1 // pred_fallthru
      _
    // Predicated region
    $region70: #{tpu_custom_call.1} parent=1 // pred_check
      _
    $region71: #{tpu_custom_call.1} parent=1 // pred_check_branch
      %121 = sbr.rel (0) target = $region73
    $region72: #{tpu_custom_call.1} parent=1 // pred_region
      %122 = dma.done [#allocation6], 128
    $region73: #{tpu_custom_call.1} parent=1 // pred_fallthru
      _
    // Predicated region
    $region74: #{tpu_custom_call.1} parent=1 // pred_check
      _
    $region75: #{tpu_custom_call.1} parent=1 // pred_check_branch
      %124 = sbr.rel (0) target = $region77
    $region76: #{tpu_custom_call.1} parent=1 // pred_region
      %125 = dma.done [#allocation6], 128
    $region77: #{tpu_custom_call.1} parent=1 // pred_fallthru
      _
    // Predicated region
    $region78: #{tpu_custom_call.1} parent=1 // pred_check
      _
    $region79: #{tpu_custom_call.1} parent=1 // pred_check_branch
      %127 = sbr.rel (0) target = $region81
    $region80: #{tpu_custom_call.1} parent=1 // pred_region
      %128 = dma.done [#allocation9], 128
    $region81: #{tpu_custom_call.1} parent=1 // pred_fallthru
      _
    // Predicated region
    $region82: #{tpu_custom_call.1} parent=1 // pred_check
      _
    $region83: #{tpu_custom_call.1} parent=1 // pred_check_branch
      %130 = sbr.rel (0) target = $region85
    $region84: #{tpu_custom_call.1} parent=1 // pred_region
      %131 = dma.done [#allocation9], 128
    $region85: #{tpu_custom_call.1} parent=1 // pred_fallthru
      _
    // Predicated region
    $region86: #{tpu_custom_call.1} parent=1 // pred_check
      _
    $region87: #{tpu_custom_call.1} parent=1 // pred_check_branch
      %133 = sbr.rel (0) target = $region89
    $region88: #{tpu_custom_call.1} parent=1 // pred_region
      %134 = dma.done [#allocation12], 4608
    $region89: #{tpu_custom_call.1} parent=1 // pred_fallthru
      _
    // Predicated region
    $region90: #{tpu_custom_call.1} parent=1 // pred_check
      _
    $region91: #{tpu_custom_call.1} parent=1 // pred_check_branch
      %136 = sbr.rel (0) target = $region93
    $region92: #{tpu_custom_call.1} parent=1 // pred_region
      %137 = dma.done [#allocation12], 48
    $region93: #{tpu_custom_call.1} parent=1 // pred_fallthru
      _
    %v139 = vld [vmem:[#allocation3] sm:$0xff]
    %v140 = vpack.c.bf16 %v139, %v139
    %v141 = vld [vmem:[%s5] sm:$0xff]
    %v142 = vld [vmem:[%s5 + $0x8] sm:$0xf]
    %v143 = vld [vmem:[%s5 + $0xc] sm:$0xff]
    %v144 = vld [vmem:[%s5 + $0x14] sm:$0xf]
    %v145 = vld [vmem:[#allocation5] sm:$0xff]
    %v146 = vpack.c.bf16 %v145, %v145
    %v147 = vld [vmem:[%s6] sm:$0xff]
    %v148 = vld [vmem:[%s6 + $0x8] sm:$0xf]
    %v149 = vld [vmem:[%s6 + $0xc] sm:$0xff]
    %v150 = vld [vmem:[%s6 + $0x14] sm:$0xf]
    %v155 = vunpack.c.l.b16 %v147
    %v156 = vunpack.c.h.b16 %v147
    %v157 = vunpack.c.l.b16 %v148
    %v158 = vunpack.c.l.b16 %v149
    %v159 = vunpack.c.h.b16 %v149
    %v160 = vunpack.c.l.b16 %v150
    %v161 = vpack.c.b16 %v158, %v155
    %v162 = vpack.c.b16 %v159, %v156
    %v163 = vpack.c.b16 %v160, %v157
    %vm167 = vcmask 130048
    %v169 = vsel %vm167, %v146, 0
    %171 = vmatprep.subr.bf16.mxu0 %v162
    %172 = vmatpush1.bf16.msra.mxu0 %v161
    %173 = vmatprep.subr.bf16.mxu0 0
    %174 = vmatpush1.bf16.msra.mxu0 0
    %175 = vmatprep.subr.bf16.mxu0 0
    %176 = vmatpush1.bf16.msra.mxu0 0
    %177 = vmatprep.subr.bf16.mxu0 0
    %178 = vmatpush1.bf16.msra.mxu0 0
    %179 = vmatprep.subr.bf16.mxu0 0
    %180 = vmatpush1.bf16.msra.mxu0 0
    %181 = vmatprep.subr.bf16.mxu0 0
    %182 = vmatpush1.bf16.msra.mxu0 0
    %183 = vmatprep.subr.bf16.mxu0 0
    %184 = vmatpush1.bf16.msra.mxu0 0
    %185 = vmatprep.subr.bf16.mxu0 0
    %186 = vmatpush1.bf16.msra.mxu0 0
    %187 = vmatprep.subr.bf16.mxu0 0
    %188 = vmatpush1.bf16.msra.mxu0 0
    %189 = vmatprep.subr.bf16.mxu0 0
    %190 = vmatpush1.bf16.msra.mxu0 0
    %191 = vmatprep.subr.bf16.mxu0 0
    %192 = vmatpush1.bf16.msra.mxu0 0
    %193 = vmatprep.subr.bf16.mxu0 0
    %194 = vmatpush1.bf16.msra.mxu0 0
    %195 = vmatprep.subr.bf16.mxu0 0
    %196 = vmatpush1.bf16.msra.mxu0 0
    %197 = vmatprep.subr.bf16.mxu0 0
    %198 = vmatpush1.bf16.msra.mxu0 0
    %199 = vmatprep.subr.bf16.mxu0 0
    %200 = vmatpush1.bf16.msra.mxu0 0
    %201 = vmatprep.subr.bf16.mxu0 0
    %202 = vmatpush1.bf16.msra.mxu0 0
    %203 = vmatprep.mubr.bf16.mxu0 0
    %204 = vmatmul.mubr.bf16.gmra.mrb[0].mxu0 %v169
    %v205 = vpop.f32.mrb[0].mxu0
    %v206 = vadd.f32 0.0, %v205
    %v207 = vpop.f32.mrb[0].mxu0
    %v208 = vadd.f32 0.0, %v207
    %v209 = vpop.f32.mrb[0].mxu0
    %v210 = vpop.f32.mrb[0].mxu0
    %211 = vdwg.mxu0
    %212 = vmatprep.subr.bf16.mxu0 0
    %213 = vmatpush1.bf16.msra.mxu0 %v163
    %214 = vmatprep.subr.bf16.mxu0 0
    %215 = vmatpush1.bf16.msra.mxu0 0
    %216 = vmatprep.subr.bf16.mxu0 0
    %217 = vmatpush1.bf16.msra.mxu0 0
    %218 = vmatprep.subr.bf16.mxu0 0
    %219 = vmatpush1.bf16.msra.mxu0 0
    %220 = vmatprep.subr.bf16.mxu0 0
    %221 = vmatpush1.bf16.msra.mxu0 0
    %222 = vmatprep.subr.bf16.mxu0 0
    %223 = vmatpush1.bf16.msra.mxu0 0
    %224 = vmatprep.subr.bf16.mxu0 0
    %225 = vmatpush1.bf16.msra.mxu0 0
    %226 = vmatprep.subr.bf16.mxu0 0
    %227 = vmatpush1.bf16.msra.mxu0 0
    %228 = vmatprep.subr.bf16.mxu0 0
    %229 = vmatpush1.bf16.msra.mxu0 0
    %230 = vmatprep.subr.bf16.mxu0 0
    %231 = vmatpush1.bf16.msra.mxu0 0
    %232 = vmatprep.subr.bf16.mxu0 0
    %233 = vmatpush1.bf16.msra.mxu0 0
    %234 = vmatprep.subr.bf16.mxu0 0
    %235 = vmatpush1.bf16.msra.mxu0 0
    %236 = vmatprep.subr.bf16.mxu0 0
    %237 = vmatpush1.bf16.msra.mxu0 0
    %238 = vmatprep.subr.bf16.mxu0 0
    %239 = vmatpush1.bf16.msra.mxu0 0
    %240 = vmatprep.subr.bf16.mxu0 0
    %241 = vmatpush1.bf16.msra.mxu0 0
    %242 = vmatprep.subr.bf16.mxu0 0
    %243 = vmatpush1.bf16.msra.mxu0 0
    %244 = vmatprep.mubr.bf16.mxu0 0
    %245 = vmatmul.mubr.bf16.gmra.mrb[0].mxu0 %v169
    %v246 = vpop.f32.mrb[0].mxu0
    %v247 = vadd.f32 0.0, %v246
    %v248 = vpop.f32.mrb[0].mxu0
    %v249 = vpop.f32.mrb[0].mxu0
    %v250 = vpop.f32.mrb[0].mxu0
    %251 = vdwg.mxu0
    %v256 = vunpack.c.l.b16 %v141
    %v257 = vunpack.c.h.b16 %v141
    %v258 = vunpack.c.l.b16 %v142
    %v259 = vunpack.c.l.b16 %v143
    %v260 = vunpack.c.h.b16 %v143
    %v261 = vunpack.c.l.b16 %v144
    %v262 = vpack.c.b16 %v259, %v256
    %v263 = vpack.c.b16 %v260, %v257
    %v264 = vpack.c.b16 %v261, %v258
    %v269 = vsel %vm167, %v140, 0
    %271 = vmatprep.subr.bf16.mxu0 %v263
    %272 = vmatpush1.bf16.msra.mxu0 %v262
    %273 = vmatprep.subr.bf16.mxu0 0
    %274 = vmatpush1.bf16.msra.mxu0 0
    %275 = vmatprep.subr.bf16.mxu0 0
    %276 = vmatpush1.bf16.msra.mxu0 0
    %277 = vmatprep.subr.bf16.mxu0 0
    %278 = vmatpush1.bf16.msra.mxu0 0
    %279 = vmatprep.subr.bf16.mxu0 0
    %280 = vmatpush1.bf16.msra.mxu0 0
    %281 = vmatprep.subr.bf16.mxu0 0
    %282 = vmatpush1.bf16.msra.mxu0 0
    %283 = vmatprep.subr.bf16.mxu0 0
    %284 = vmatpush1.bf16.msra.mxu0 0
    %285 = vmatprep.subr.bf16.mxu0 0
    %286 = vmatpush1.bf16.msra.mxu0 0
    %287 = vmatprep.subr.bf16.mxu0 0
    %288 = vmatpush1.bf16.msra.mxu0 0
    %289 = vmatprep.subr.bf16.mxu0 0
    %290 = vmatpush1.bf16.msra.mxu0 0
    %291 = vmatprep.subr.bf16.mxu0 0
    %292 = vmatpush1.bf16.msra.mxu0 0
    %293 = vmatprep.subr.bf16.mxu0 0
    %294 = vmatpush1.bf16.msra.mxu0 0
    %295 = vmatprep.subr.bf16.mxu0 0
    %296 = vmatpush1.bf16.msra.mxu0 0
    %297 = vmatprep.subr.bf16.mxu0 0
    %298 = vmatpush1.bf16.msra.mxu0 0
    %299 = vmatprep.subr.bf16.mxu0 0
    %300 = vmatpush1.bf16.msra.mxu0 0
    %301 = vmatprep.subr.bf16.mxu0 0
    %302 = vmatpush1.bf16.msra.mxu0 0
    %303 = vmatprep.mubr.bf16.mxu0 0
    %304 = vmatmul.mubr.bf16.gmra.mrb[0].mxu0 %v269
    %v305 = vpop.f32.mrb[0].mxu0
    %v306 = vadd.f32 %v206, %v305
    %v307 = vpop.f32.mrb[0].mxu0
    %v308 = vadd.f32 %v208, %v307
    %v309 = vpop.f32.mrb[0].mxu0
    %v310 = vpop.f32.mrb[0].mxu0
    %311 = vdwg.mxu0
    %312 = vmatprep.subr.bf16.mxu0 0
    %313 = vmatpush1.bf16.msra.mxu0 %v264
    %314 = vmatprep.subr.bf16.mxu0 0
    %315 = vmatpush1.bf16.msra.mxu0 0
    %316 = vmatprep.subr.bf16.mxu0 0
    %317 = vmatpush1.bf16.msra.mxu0 0
    %318 = vmatprep.subr.bf16.mxu0 0
    %319 = vmatpush1.bf16.msra.mxu0 0
    %320 = vmatprep.subr.bf16.mxu0 0
    %321 = vmatpush1.bf16.msra.mxu0 0
    %322 = vmatprep.subr.bf16.mxu0 0
    %323 = vmatpush1.bf16.msra.mxu0 0
    %324 = vmatprep.subr.bf16.mxu0 0
    %325 = vmatpush1.bf16.msra.mxu0 0
    %326 = vmatprep.subr.bf16.mxu0 0
    %327 = vmatpush1.bf16.msra.mxu0 0
    %328 = vmatprep.subr.bf16.mxu0 0
    %329 = vmatpush1.bf16.msra.mxu0 0
    %330 = vmatprep.subr.bf16.mxu0 0
    %331 = vmatpush1.bf16.msra.mxu0 0
    %332 = vmatprep.subr.bf16.mxu0 0
    %333 = vmatpush1.bf16.msra.mxu0 0
    %334 = vmatprep.subr.bf16.mxu0 0
    %335 = vmatpush1.bf16.msra.mxu0 0
    %336 = vmatprep.subr.bf16.mxu0 0
    %337 = vmatpush1.bf16.msra.mxu0 0
    %338 = vmatprep.subr.bf16.mxu0 0
    %339 = vmatpush1.bf16.msra.mxu0 0
    %340 = vmatprep.subr.bf16.mxu0 0
    %341 = vmatpush1.bf16.msra.mxu0 0
    %342 = vmatprep.subr.bf16.mxu0 0
    %343 = vmatpush1.bf16.msra.mxu0 0
    %344 = vmatprep.mubr.bf16.mxu0 0
    %345 = vmatmul.mubr.bf16.gmra.mrb[0].mxu0 %v269
    %v346 = vpop.f32.mrb[0].mxu0
    %v347 = vadd.f32 %v247, %v346
    %v348 = vpop.f32.mrb[0].mxu0
    %v349 = vpop.f32.mrb[0].mxu0
    %v350 = vpop.f32.mrb[0].mxu0
    %351 = vdwg.mxu0
    %v352 = vld [vmem:[#allocation7] sm:$0xff]
    %v353 = vpack.c.bf16 %v352, %v352
    %v354 = vld [vmem:[%s7] sm:$0xff]
    %v355 = vld [vmem:[%s7 + $0x8] sm:$0xf]
    %v358 = vunpack.c.l.b16 %v354
    %v359 = vunpack.c.h.b16 %v354
    %v360 = vunpack.c.l.b16 %v355
    %v361 = vpack.c.b16 %v358, %v358
    %v362 = vpack.c.b16 %v359, %v359
    %v363 = vpack.c.b16 %v360, %v360
    %vm364 = vcmask 64512
    %v366 = vsel %vm364, %v353, 0
    %vm368 = vcmask 1043456
    %v370 = vsel %vm368, %v361, 0
    %v373 = vsel %vm368, %v362, 0
    %v376 = vsel %vm368, %v363, 0
    %378 = vmatprep.subr.bf16.mxu0 %v373
    %379 = vmatpush1.bf16.msra.mxu0 %v370
    %380 = vmatprep.subr.bf16.mxu0 0
    %381 = vmatpush1.bf16.msra.mxu0 0
    %382 = vmatprep.subr.bf16.mxu0 0
    %383 = vmatpush1.bf16.msra.mxu0 0
    %384 = vmatprep.subr.bf16.mxu0 0
    %385 = vmatpush1.bf16.msra.mxu0 0
    %386 = vmatprep.subr.bf16.mxu0 0
    %387 = vmatpush1.bf16.msra.mxu0 0
    %388 = vmatprep.subr.bf16.mxu0 0
    %389 = vmatpush1.bf16.msra.mxu0 0
    %390 = vmatprep.subr.bf16.mxu0 0
    %391 = vmatpush1.bf16.msra.mxu0 0
    %392 = vmatprep.subr.bf16.mxu0 0
    %393 = vmatpush1.bf16.msra.mxu0 0
    %394 = vmatprep.subr.bf16.mxu0 0
    %395 = vmatpush1.bf16.msra.mxu0 0
    %396 = vmatprep.subr.bf16.mxu0 0
    %397 = vmatpush1.bf16.msra.mxu0 0
    %398 = vmatprep.subr.bf16.mxu0 0
    %399 = vmatpush1.bf16.msra.mxu0 0
    %400 = vmatprep.subr.bf16.mxu0 0
    %401 = vmatpush1.bf16.msra.mxu0 0
    %402 = vmatprep.subr.bf16.mxu0 0
    %403 = vmatpush1.bf16.msra.mxu0 0
    %404 = vmatprep.subr.bf16.mxu0 0
    %405 = vmatpush1.bf16.msra.mxu0 0
    %406 = vmatprep.subr.bf16.mxu0 0
    %407 = vmatpush1.bf16.msra.mxu0 0
    %408 = vmatprep.subr.bf16.mxu0 0
    %409 = vmatpush1.bf16.msra.mxu0 0
    %410 = vmatprep.mubr.bf16.mxu0 0
    %411 = vmatmul.mubr.bf16.gmra.mrb[0].mxu0 %v366
    %v412 = vpop.f32.mrb[0].mxu0
    %v413 = vadd.f32 0.0, %v412
    %v414 = vpop.f32.mrb[0].mxu0
    %v415 = vadd.f32 0.0, %v414
    %v416 = vpop.f32.mrb[0].mxu0
    %v417 = vpop.f32.mrb[0].mxu0
    %418 = vdwg.mxu0
    %419 = vmatprep.subr.bf16.mxu0 0
    %420 = vmatpush1.bf16.msra.mxu0 %v376
    %421 = vmatprep.subr.bf16.mxu0 0
    %422 = vmatpush1.bf16.msra.mxu0 0
    %423 = vmatprep.subr.bf16.mxu0 0
    %424 = vmatpush1.bf16.msra.mxu0 0
    %425 = vmatprep.subr.bf16.mxu0 0
    %426 = vmatpush1.bf16.msra.mxu0 0
    %427 = vmatprep.subr.bf16.mxu0 0
    %428 = vmatpush1.bf16.msra.mxu0 0
    %429 = vmatprep.subr.bf16.mxu0 0
    %430 = vmatpush1.bf16.msra.mxu0 0
    %431 = vmatprep.subr.bf16.mxu0 0
    %432 = vmatpush1.bf16.msra.mxu0 0
    %433 = vmatprep.subr.bf16.mxu0 0
    %434 = vmatpush1.bf16.msra.mxu0 0
    %435 = vmatprep.subr.bf16.mxu0 0
    %436 = vmatpush1.bf16.msra.mxu0 0
    %437 = vmatprep.subr.bf16.mxu0 0
    %438 = vmatpush1.bf16.msra.mxu0 0
    %439 = vmatprep.subr.bf16.mxu0 0
    %440 = vmatpush1.bf16.msra.mxu0 0
    %441 = vmatprep.subr.bf16.mxu0 0
    %442 = vmatpush1.bf16.msra.mxu0 0
    %443 = vmatprep.subr.bf16.mxu0 0
    %444 = vmatpush1.bf16.msra.mxu0 0
    %445 = vmatprep.subr.bf16.mxu0 0
    %446 = vmatpush1.bf16.msra.mxu0 0
    %447 = vmatprep.subr.bf16.mxu0 0
    %448 = vmatpush1.bf16.msra.mxu0 0
    %449 = vmatprep.subr.bf16.mxu0 0
    %450 = vmatpush1.bf16.msra.mxu0 0
    %451 = vmatprep.mubr.bf16.mxu0 0
    %452 = vmatmul.mubr.bf16.gmra.mrb[0].mxu0 %v366
    %v453 = vpop.f32.mrb[0].mxu0
    %v454 = vadd.f32 0.0, %v453
    %v455 = vpop.f32.mrb[0].mxu0
    %v456 = vpop.f32.mrb[0].mxu0
    %v457 = vpop.f32.mrb[0].mxu0
    %458 = vdwg.mxu0
    %v459 = vadd.f32 %v306, %v413
    %v460 = vadd.f32 %v308, %v415
    %v461 = vadd.f32 %v347, %v454
    %v462 = vld [vmem:[#allocation8] sm:$0xff]
    %v463 = vpack.c.bf16 %v462, %v462
    %v464 = vld [vmem:[%s8] sm:$0xff]
    %v465 = vld [vmem:[%s8 + $0x8] sm:$0xf]
    %v468 = vunpack.c.l.b16 %v464
    %v469 = vunpack.c.h.b16 %v464
    %v470 = vunpack.c.l.b16 %v465
    %v471 = vpack.c.b16 %v468, %v468
    %v472 = vpack.c.b16 %v469, %v469
    %v473 = vpack.c.b16 %v470, %v470
    %v475 = vsel %vm364, %v463, 0
    %v478 = vsel %vm368, %v471, 0
    %v481 = vsel %vm368, %v472, 0
    %v484 = vsel %vm368, %v473, 0
    %486 = vmatprep.subr.bf16.mxu0 %v481
    %487 = vmatpush1.bf16.msra.mxu0 %v478
    %488 = vmatprep.subr.bf16.mxu0 0
    %489 = vmatpush1.bf16.msra.mxu0 0
    %490 = vmatprep.subr.bf16.mxu0 0
    %491 = vmatpush1.bf16.msra.mxu0 0
    %492 = vmatprep.subr.bf16.mxu0 0
    %493 = vmatpush1.bf16.msra.mxu0 0
    %494 = vmatprep.subr.bf16.mxu0 0
    %495 = vmatpush1.bf16.msra.mxu0 0
    %496 = vmatprep.subr.bf16.mxu0 0
    %497 = vmatpush1.bf16.msra.mxu0 0
    %498 = vmatprep.subr.bf16.mxu0 0
    %499 = vmatpush1.bf16.msra.mxu0 0
    %500 = vmatprep.subr.bf16.mxu0 0
    %501 = vmatpush1.bf16.msra.mxu0 0
    %502 = vmatprep.subr.bf16.mxu0 0
    %503 = vmatpush1.bf16.msra.mxu0 0
    %504 = vmatprep.subr.bf16.mxu0 0
    %505 = vmatpush1.bf16.msra.mxu0 0
    %506 = vmatprep.subr.bf16.mxu0 0
    %507 = vmatpush1.bf16.msra.mxu0 0
    %508 = vmatprep.subr.bf16.mxu0 0
    %509 = vmatpush1.bf16.msra.mxu0 0
    %510 = vmatprep.subr.bf16.mxu0 0
    %511 = vmatpush1.bf16.msra.mxu0 0
    %512 = vmatprep.subr.bf16.mxu0 0
    %513 = vmatpush1.bf16.msra.mxu0 0
    %514 = vmatprep.subr.bf16.mxu0 0
    %515 = vmatpush1.bf16.msra.mxu0 0
    %516 = vmatprep.subr.bf16.mxu0 0
    %517 = vmatpush1.bf16.msra.mxu0 0
    %518 = vmatprep.mubr.bf16.mxu0 0
    %519 = vmatmul.mubr.bf16.gmra.mrb[0].mxu0 %v475
    %v520 = vpop.f32.mrb[0].mxu0
    %v521 = vadd.f32 0.0, %v520
    %v522 = vpop.f32.mrb[0].mxu0
    %v523 = vadd.f32 0.0, %v522
    %v524 = vpop.f32.mrb[0].mxu0
    %v525 = vpop.f32.mrb[0].mxu0
    %526 = vdwg.mxu0
    %527 = vmatprep.subr.bf16.mxu0 0
    %528 = vmatpush1.bf16.msra.mxu0 %v484
    %529 = vmatprep.subr.bf16.mxu0 0
    %530 = vmatpush1.bf16.msra.mxu0 0
    %531 = vmatprep.subr.bf16.mxu0 0
    %532 = vmatpush1.bf16.msra.mxu0 0
    %533 = vmatprep.subr.bf16.mxu0 0
    %534 = vmatpush1.bf16.msra.mxu0 0
    %535 = vmatprep.subr.bf16.mxu0 0
    %536 = vmatpush1.bf16.msra.mxu0 0
    %537 = vmatprep.subr.bf16.mxu0 0
    %538 = vmatpush1.bf16.msra.mxu0 0
    %539 = vmatprep.subr.bf16.mxu0 0
    %540 = vmatpush1.bf16.msra.mxu0 0
    %541 = vmatprep.subr.bf16.mxu0 0
    %542 = vmatpush1.bf16.msra.mxu0 0
    %543 = vmatprep.subr.bf16.mxu0 0
    %544 = vmatpush1.bf16.msra.mxu0 0
    %545 = vmatprep.subr.bf16.mxu0 0
    %546 = vmatpush1.bf16.msra.mxu0 0
    %547 = vmatprep.subr.bf16.mxu0 0
    %548 = vmatpush1.bf16.msra.mxu0 0
    %549 = vmatprep.subr.bf16.mxu0 0
    %550 = vmatpush1.bf16.msra.mxu0 0
    %551 = vmatprep.subr.bf16.mxu0 0
    %552 = vmatpush1.bf16.msra.mxu0 0
    %553 = vmatprep.subr.bf16.mxu0 0
    %554 = vmatpush1.bf16.msra.mxu0 0
    %555 = vmatprep.subr.bf16.mxu0 0
    %556 = vmatpush1.bf16.msra.mxu0 0
    %557 = vmatprep.subr.bf16.mxu0 0
    %558 = vmatpush1.bf16.msra.mxu0 0
    %559 = vmatprep.mubr.bf16.mxu0 0
    %560 = vmatmul.mubr.bf16.gmra.mrb[0].mxu0 %v475
    %v561 = vpop.f32.mrb[0].mxu0
    %v562 = vadd.f32 0.0, %v561
    %v563 = vpop.f32.mrb[0].mxu0
    %v564 = vpop.f32.mrb[0].mxu0
    %v565 = vpop.f32.mrb[0].mxu0
    %566 = vdwg.mxu0
    %v567 = vadd.f32 %v459, %v521
    %v568 = vadd.f32 %v460, %v523
    %v569 = vadd.f32 %v461, %v562
    %v570 = vld [vmem:[#allocation10] sm:$0xff]
    %v571 = vpack.c.bf16 %v570, %v570
    %v572 = vld [vmem:[%s9] sm:$0xff]
    %v573 = vld [vmem:[%s9 + $0x8] sm:$0xf]
    %v576 = vunpack.c.l.b16 %v572
    %v577 = vunpack.c.h.b16 %v572
    %v578 = vunpack.c.l.b16 %v573
    %v579 = vpack.c.b16 %v576, %v576
    %v580 = vpack.c.b16 %v577, %v577
    %v581 = vpack.c.b16 %v578, %v578
    %v583 = vsel %vm364, %v571, 0
    %v586 = vsel %vm368, %v579, 0
    %v589 = vsel %vm368, %v580, 0
    %v592 = vsel %vm368, %v581, 0
    %594 = vmatprep.subr.bf16.mxu0 %v589
    %595 = vmatpush1.bf16.msra.mxu0 %v586
    %596 = vmatprep.subr.bf16.mxu0 0
    %597 = vmatpush1.bf16.msra.mxu0 0
    %598 = vmatprep.subr.bf16.mxu0 0
    %599 = vmatpush1.bf16.msra.mxu0 0
    %600 = vmatprep.subr.bf16.mxu0 0
    %601 = vmatpush1.bf16.msra.mxu0 0
    %602 = vmatprep.subr.bf16.mxu0 0
    %603 = vmatpush1.bf16.msra.mxu0 0
    %604 = vmatprep.subr.bf16.mxu0 0
    %605 = vmatpush1.bf16.msra.mxu0 0
    %606 = vmatprep.subr.bf16.mxu0 0
    %607 = vmatpush1.bf16.msra.mxu0 0
    %608 = vmatprep.subr.bf16.mxu0 0
    %609 = vmatpush1.bf16.msra.mxu0 0
    %610 = vmatprep.subr.bf16.mxu0 0
    %611 = vmatpush1.bf16.msra.mxu0 0
    %612 = vmatprep.subr.bf16.mxu0 0
    %613 = vmatpush1.bf16.msra.mxu0 0
    %614 = vmatprep.subr.bf16.mxu0 0
    %615 = vmatpush1.bf16.msra.mxu0 0
    %616 = vmatprep.subr.bf16.mxu0 0
    %617 = vmatpush1.bf16.msra.mxu0 0
    %618 = vmatprep.subr.bf16.mxu0 0
    %619 = vmatpush1.bf16.msra.mxu0 0
    %620 = vmatprep.subr.bf16.mxu0 0
    %621 = vmatpush1.bf16.msra.mxu0 0
    %622 = vmatprep.subr.bf16.mxu0 0
    %623 = vmatpush1.bf16.msra.mxu0 0
    %624 = vmatprep.subr.bf16.mxu0 0
    %625 = vmatpush1.bf16.msra.mxu0 0
    %626 = vmatprep.mubr.bf16.mxu0 0
    %627 = vmatmul.mubr.bf16.gmra.mrb[0].mxu0 %v583
    %v628 = vpop.f32.mrb[0].mxu0
    %v629 = vadd.f32 0.0, %v628
    %v630 = vpop.f32.mrb[0].mxu0
    %v631 = vadd.f32 0.0, %v630
    %v632 = vpop.f32.mrb[0].mxu0
    %v633 = vpop.f32.mrb[0].mxu0
    %634 = vdwg.mxu0
    %635 = vmatprep.subr.bf16.mxu0 0
    %636 = vmatpush1.bf16.msra.mxu0 %v592
    %637 = vmatprep.subr.bf16.mxu0 0
    %638 = vmatpush1.bf16.msra.mxu0 0
    %639 = vmatprep.subr.bf16.mxu0 0
    %640 = vmatpush1.bf16.msra.mxu0 0
    %641 = vmatprep.subr.bf16.mxu0 0
    %642 = vmatpush1.bf16.msra.mxu0 0
    %643 = vmatprep.subr.bf16.mxu0 0
    %644 = vmatpush1.bf16.msra.mxu0 0
    %645 = vmatprep.subr.bf16.mxu0 0
    %646 = vmatpush1.bf16.msra.mxu0 0
    %647 = vmatprep.subr.bf16.mxu0 0
    %648 = vmatpush1.bf16.msra.mxu0 0
    %649 = vmatprep.subr.bf16.mxu0 0
    %650 = vmatpush1.bf16.msra.mxu0 0
    %651 = vmatprep.subr.bf16.mxu0 0
    %652 = vmatpush1.bf16.msra.mxu0 0
    %653 = vmatprep.subr.bf16.mxu0 0
    %654 = vmatpush1.bf16.msra.mxu0 0
    %655 = vmatprep.subr.bf16.mxu0 0
    %656 = vmatpush1.bf16.msra.mxu0 0
    %657 = vmatprep.subr.bf16.mxu0 0
    %658 = vmatpush1.bf16.msra.mxu0 0
    %659 = vmatprep.subr.bf16.mxu0 0
    %660 = vmatpush1.bf16.msra.mxu0 0
    %661 = vmatprep.subr.bf16.mxu0 0
    %662 = vmatpush1.bf16.msra.mxu0 0
    %663 = vmatprep.subr.bf16.mxu0 0
    %664 = vmatpush1.bf16.msra.mxu0 0
    %665 = vmatprep.subr.bf16.mxu0 0
    %666 = vmatpush1.bf16.msra.mxu0 0
    %667 = vmatprep.mubr.bf16.mxu0 0
    %668 = vmatmul.mubr.bf16.gmra.mrb[0].mxu0 %v583
    %v669 = vpop.f32.mrb[0].mxu0
    %v670 = vadd.f32 0.0, %v669
    %v671 = vpop.f32.mrb[0].mxu0
    %v672 = vpop.f32.mrb[0].mxu0
    %v673 = vpop.f32.mrb[0].mxu0
    %674 = vdwg.mxu0
    %v675 = vadd.f32 %v567, %v629
    %v676 = vadd.f32 %v568, %v631
    %v677 = vadd.f32 %v569, %v670
    %v678 = vld [vmem:[%s10] sm:$0x7]
    %v680 = vlaneseq
    %v681 = vshrl.u32 %v680, 7
    %v682 = vsub.s32 0, %v681
    %v683 = vrot.slane %v678, %v682
    %v684 = vlaneseq
    %v685 = vshrl.u32 %v684, 7
    %v686 = vsub.s32 1, %v685
    %v687 = vrot.slane %v678, %v686
    %v688 = vlaneseq
    %v689 = vshrl.u32 %v688, 7
    %v690 = vsub.s32 2, %v689
    %v691 = vrot.slane %v678, %v690
    %v695 = vadd.f32 %v675, %v683
    %v696 = vadd.f32 %v676, %v687
    %v697 = vadd.f32 %v677, %v691
    %v698 = vtanh.pop %v695
    %v699 = vpack.c.bf16 %v698, %v698
    %v700 = vld [vmem:[%s11] sm:$0xff]
    %v701 = vld [vmem:[%s11 + $0x8] sm:$0xff]
    %v702 = vld [vmem:[%s11 + $0x10] sm:$0xff]
    %v703 = vld [vmem:[%s11 + $0x18] sm:$0xff]
    %v704 = vld [vmem:[%s11 + $0x20] sm:$0xff]
    %v705 = vld [vmem:[%s11 + $0x28] sm:$0xff]
    %v706 = vld [vmem:[%s11 + $0x30] sm:$0xff]
    %v707 = vld [vmem:[%s11 + $0x38] sm:$0xff]
    %v708 = vld [vmem:[%s11 + $0x40] sm:$0xff]
    %v709 = vld [vmem:[%s11 + $0x48] sm:$0xff]
    %v710 = vld [vmem:[%s11 + $0x50] sm:$0xff]
    %v711 = vld [vmem:[%s11 + $0x58] sm:$0xff]
    %v712 = vld [vmem:[%s11 + $0x60] sm:$0xff]
    %v713 = vld [vmem:[%s11 + $0x68] sm:$0xff]
    %v714 = vld [vmem:[%s11 + $0x70] sm:$0xff]
    %v715 = vld [vmem:[%s11 + $0x78] sm:$0xff]
    %v732 = vunpack.c.l.b16 %v700
    %v733 = vunpack.c.h.b16 %v700
    %v734 = vunpack.c.l.b16 %v701
    %v735 = vunpack.c.h.b16 %v701
    %v736 = vunpack.c.l.b16 %v702
    %v737 = vunpack.c.h.b16 %v702
    %v738 = vunpack.c.l.b16 %v703
    %v739 = vunpack.c.h.b16 %v703
    %v740 = vunpack.c.l.b16 %v704
    %v741 = vunpack.c.h.b16 %v704
    %v742 = vunpack.c.l.b16 %v705
    %v743 = vunpack.c.h.b16 %v705
    %v744 = vunpack.c.l.b16 %v706
    %v745 = vunpack.c.h.b16 %v706
    %v746 = vunpack.c.l.b16 %v707
    %v747 = vunpack.c.h.b16 %v707
    %v748 = vunpack.c.l.b16 %v708
    %v749 = vunpack.c.h.b16 %v708
    %v750 = vunpack.c.l.b16 %v709
    %v751 = vunpack.c.h.b16 %v709
    %v752 = vunpack.c.l.b16 %v710
    %v753 = vunpack.c.h.b16 %v710
    %v754 = vunpack.c.l.b16 %v711
    %v755 = vunpack.c.h.b16 %v711
    %v756 = vunpack.c.l.b16 %v712
    %v757 = vunpack.c.h.b16 %v712
    %v758 = vunpack.c.l.b16 %v713
    %v759 = vunpack.c.h.b16 %v713
    %v760 = vunpack.c.l.b16 %v714
    %v761 = vunpack.c.h.b16 %v714
    %v762 = vunpack.c.l.b16 %v715
    %v763 = vunpack.c.h.b16 %v715
    %v764 = vpack.c.b16 %v734, %v732
    %v765 = vpack.c.b16 %v735, %v733
    %v766 = vpack.c.b16 %v738, %v736
    %v767 = vpack.c.b16 %v739, %v737
    %v768 = vpack.c.b16 %v742, %v740
    %v769 = vpack.c.b16 %v743, %v741
    %v770 = vpack.c.b16 %v746, %v744
    %v771 = vpack.c.b16 %v747, %v745
    %v772 = vpack.c.b16 %v750, %v748
    %v773 = vpack.c.b16 %v751, %v749
    %v774 = vpack.c.b16 %v754, %v752
    %v775 = vpack.c.b16 %v755, %v753
    %v776 = vpack.c.b16 %v758, %v756
    %v777 = vpack.c.b16 %v759, %v757
    %v778 = vpack.c.b16 %v762, %v760
    %v779 = vpack.c.b16 %v763, %v761
    %796 = vmatprep.subr.bf16.mxu0 %v765
    %797 = vmatpush1.bf16.msra.mxu0 %v764
    %798 = vmatprep.subr.bf16.mxu0 %v767
    %799 = vmatpush1.bf16.msra.mxu0 %v766
    %800 = vmatprep.subr.bf16.mxu0 %v769
    %801 = vmatpush1.bf16.msra.mxu0 %v768
    %802 = vmatprep.subr.bf16.mxu0 %v771
    %803 = vmatpush1.bf16.msra.mxu0 %v770
    %804 = vmatprep.subr.bf16.mxu0 %v773
    %805 = vmatpush1.bf16.msra.mxu0 %v772
    %806 = vmatprep.subr.bf16.mxu0 %v775
    %807 = vmatpush1.bf16.msra.mxu0 %v774
    %808 = vmatprep.subr.bf16.mxu0 %v777
    %809 = vmatpush1.bf16.msra.mxu0 %v776
    %810 = vmatprep.subr.bf16.mxu0 %v779
    %811 = vmatpush1.bf16.msra.mxu0 %v778
    %812 = vmatprep.subr.bf16.mxu0 0
    %813 = vmatpush1.bf16.msra.mxu0 0
    %814 = vmatprep.subr.bf16.mxu0 0
    %815 = vmatpush1.bf16.msra.mxu0 0
    %816 = vmatprep.subr.bf16.mxu0 0
    %817 = vmatpush1.bf16.msra.mxu0 0
    %818 = vmatprep.subr.bf16.mxu0 0
    %819 = vmatpush1.bf16.msra.mxu0 0
    %820 = vmatprep.subr.bf16.mxu0 0
    %821 = vmatpush1.bf16.msra.mxu0 0
    %822 = vmatprep.subr.bf16.mxu0 0
    %823 = vmatpush1.bf16.msra.mxu0 0
    %824 = vmatprep.subr.bf16.mxu0 0
    %825 = vmatpush1.bf16.msra.mxu0 0
    %826 = vmatprep.subr.bf16.mxu0 0
    %827 = vmatpush1.bf16.msra.mxu0 0
    %828 = vmatprep.mubr.bf16.mxu0 0
    %829 = vmatmul.mubr.bf16.gmra.mrb[0].mxu0 %v699
    %v830 = vpop.f32.mrb[0].mxu0
    %v831 = vadd.f32 %v696, %v830
    %v832 = vpop.f32.mrb[0].mxu0
    %v833 = vadd.f32 %v697, %v832
    %v834 = vpop.f32.mrb[0].mxu0
    %v835 = vpop.f32.mrb[0].mxu0
    %836 = vdwg.mxu0
    %v837 = vmax.f32 %v831, 0.0
    %v838 = vmax.f32 %v833, 0.0
    %v839 = vpack.c.bf16 %v837, %v837
    %v840 = vpack.c.bf16 %v838, %v838
    %v841 = vld [vmem:[#allocation11] sm:$0xff]
    %v842 = vld [vmem:[#allocation11 + $0x8] sm:$0xf]
    %v843 = vld [vmem:[#allocation11 + $0xc] sm:$0xff]
    %v844 = vld [vmem:[#allocation11 + $0x14] sm:$0xf]
    %v845 = vld [vmem:[#allocation11 + $0x18] sm:$0xff]
    %v846 = vld [vmem:[#allocation11 + $0x20] sm:$0xf]
    %v847 = vld [vmem:[#allocation11 + $0x24] sm:$0xff]
    %v848 = vld [vmem:[#allocation11 + $0x2c] sm:$0xf]
    %v849 = vld [vmem:[#allocation11 + $0x30] sm:$0xff]
    %v850 = vld [vmem:[#allocation11 + $0x38] sm:$0xf]
    %v851 = vld [vmem:[#allocation11 + $0x3c] sm:$0xff]
    %v852 = vld [vmem:[#allocation11 + $0x44] sm:$0xf]
    %v853 = vld [vmem:[#allocation11 + $0x48] sm:$0xff]
    %v854 = vld [vmem:[#allocation11 + $0x50] sm:$0xf]
    %v855 = vld [vmem:[#allocation11 + $0x54] sm:$0xff]
    %v856 = vld [vmem:[#allocation11 + $0x5c] sm:$0xf]
    %v857 = vld [vmem:[#allocation11 + $0x60] sm:$0xff]
    %v858 = vld [vmem:[#allocation11 + $0x68] sm:$0xf]
    %v859 = vld [vmem:[#allocation11 + $0x6c] sm:$0xff]
    %v860 = vld [vmem:[#allocation11 + $0x74] sm:$0xf]
    %v861 = vld [vmem:[#allocation11 + $0x78] sm:$0xff]
    %v862 = vld [vmem:[#allocation11 + $0x80] sm:$0xf]
    %v863 = vld [vmem:[#allocation11 + $0x84] sm:$0xff]
    %v864 = vld [vmem:[#allocation11 + $0x8c] sm:$0xf]
    %v865 = vld [vmem:[#allocation11 + $0x90] sm:$0xff]
    %v866 = vld [vmem:[#allocation11 + $0x98] sm:$0xf]
    %v867 = vld [vmem:[#allocation11 + $0x9c] sm:$0xff]
    %v868 = vld [vmem:[#allocation11 + $0xa4] sm:$0xf]
    %v869 = vld [vmem:[#allocation11 + $0xa8] sm:$0xff]
    %v870 = vld [vmem:[#allocation11 + $0xb0] sm:$0xf]
    %v871 = vld [vmem:[#allocation11 + $0xb4] sm:$0xff]
    %v872 = vld [vmem:[#allocation11 + $0xbc] sm:$0xf]
    %v873 = vld [vmem:[#allocation11 + $0xc0] sm:$0xff]
    %v874 = vld [vmem:[#allocation11 + $0xc8] sm:$0xf]
    %v875 = vld [vmem:[#allocation11 + $0xcc] sm:$0xff]
    %v876 = vld [vmem:[#allocation11 + $0xd4] sm:$0xf]
    %v877 = vld [vmem:[#allocation11 + $0xd8] sm:$0xff]
    %v878 = vld [vmem:[#allocation11 + $0xe0] sm:$0xf]
    %v879 = vld [vmem:[#allocation11 + $0xe4] sm:$0xff]
    %v880 = vld [vmem:[#allocation11 + $0xec] sm:$0xf]
    %v881 = vld [vmem:[#allocation11 + $0xf0] sm:$0xff]
    %v882 = vld [vmem:[#allocation11 + $0xf8] sm:$0xf]
    %v883 = vld [vmem:[#allocation11 + $0xfc] sm:$0xff]
    %v884 = vld [vmem:[#allocation11 + $0x104] sm:$0xf]
    %v885 = vld [vmem:[#allocation11 + $0x108] sm:$0xff]
    %v886 = vld [vmem:[#allocation11 + $0x110] sm:$0xf]
    %v887 = vld [vmem:[#allocation11 + $0x114] sm:$0xff]
    %v888 = vld [vmem:[#allocation11 + $0x11c] sm:$0xf]
    %v889 = vld [vmem:[#allocation13] sm:$0x7]
    %v891 = vlaneseq
    %v892 = vshrl.u32 %v891, 7
    %v893 = vsub.s32 0, %v892
    %v894 = vrot.slane %v889, %v893
    %v895 = vlaneseq
    %v896 = vshrl.u32 %v895, 7
    %v897 = vsub.s32 1, %v896
    %v898 = vrot.slane %v889, %v897
    %v899 = vlaneseq
    %v900 = vshrl.u32 %v899, 7
    %v901 = vsub.s32 2, %v900
    %v902 = vrot.slane %v889, %v901
    %v954 = vunpack.c.l.b16 %v841
    %v955 = vunpack.c.h.b16 %v841
    %v956 = vunpack.c.l.b16 %v842
    %v957 = vunpack.c.l.b16 %v843
    %v958 = vunpack.c.h.b16 %v843
    %v959 = vunpack.c.l.b16 %v844
    %v960 = vunpack.c.l.b16 %v845
    %v961 = vunpack.c.h.b16 %v845
    %v962 = vunpack.c.l.b16 %v846
    %v963 = vunpack.c.l.b16 %v847
    %v964 = vunpack.c.h.b16 %v847
    %v965 = vunpack.c.l.b16 %v848
    %v966 = vunpack.c.l.b16 %v849
    %v967 = vunpack.c.h.b16 %v849
    %v968 = vunpack.c.l.b16 %v850
    %v969 = vunpack.c.l.b16 %v851
    %v970 = vunpack.c.h.b16 %v851
    %v971 = vunpack.c.l.b16 %v852
    %v972 = vunpack.c.l.b16 %v853
    %v973 = vunpack.c.h.b16 %v853
    %v974 = vunpack.c.l.b16 %v854
    %v975 = vunpack.c.l.b16 %v855
    %v976 = vunpack.c.h.b16 %v855
    %v977 = vunpack.c.l.b16 %v856
    %v978 = vunpack.c.l.b16 %v857
    %v979 = vunpack.c.h.b16 %v857
    %v980 = vunpack.c.l.b16 %v858
    %v981 = vunpack.c.l.b16 %v859
    %v982 = vunpack.c.h.b16 %v859
    %v983 = vunpack.c.l.b16 %v860
    %v984 = vunpack.c.l.b16 %v861
    %v985 = vunpack.c.h.b16 %v861
    %v986 = vunpack.c.l.b16 %v862
    %v987 = vunpack.c.l.b16 %v863
    %v988 = vunpack.c.h.b16 %v863
    %v989 = vunpack.c.l.b16 %v864
    %v990 = vunpack.c.l.b16 %v865
    %v991 = vunpack.c.h.b16 %v865
    %v992 = vunpack.c.l.b16 %v866
    %v993 = vunpack.c.l.b16 %v867
    %v994 = vunpack.c.h.b16 %v867
    %v995 = vunpack.c.l.b16 %v868
    %v996 = vunpack.c.l.b16 %v869
    %v997 = vunpack.c.h.b16 %v869
    %v998 = vunpack.c.l.b16 %v870
    %v999 = vunpack.c.l.b16 %v871
    %v1000 = vunpack.c.h.b16 %v871
    %v1001 = vunpack.c.l.b16 %v872
    %v1002 = vunpack.c.l.b16 %v873
    %v1003 = vunpack.c.h.b16 %v873
    %v1004 = vunpack.c.l.b16 %v874
    %v1005 = vunpack.c.l.b16 %v875
    %v1006 = vunpack.c.h.b16 %v875
    %v1007 = vunpack.c.l.b16 %v876
    %v1008 = vunpack.c.l.b16 %v877
    %v1009 = vunpack.c.h.b16 %v877
    %v1010 = vunpack.c.l.b16 %v878
    %v1011 = vunpack.c.l.b16 %v879
    %v1012 = vunpack.c.h.b16 %v879
    %v1013 = vunpack.c.l.b16 %v880
    %v1014 = vunpack.c.l.b16 %v881
    %v1015 = vunpack.c.h.b16 %v881
    %v1016 = vunpack.c.l.b16 %v882
    %v1017 = vunpack.c.l.b16 %v883
    %v1018 = vunpack.c.h.b16 %v883
    %v1019 = vunpack.c.l.b16 %v884
    %v1020 = vunpack.c.l.b16 %v885
    %v1021 = vunpack.c.h.b16 %v885
    %v1022 = vunpack.c.l.b16 %v886
    %v1023 = vunpack.c.l.b16 %v887
    %v1024 = vunpack.c.h.b16 %v887
    %v1025 = vunpack.c.l.b16 %v888
    %v1026 = vpack.c.b16 %v957, %v954
    %v1027 = vpack.c.b16 %v958, %v955
    %v1028 = vpack.c.b16 %v959, %v956
    %v1029 = vpack.c.b16 %v963, %v960
    %v1030 = vpack.c.b16 %v964, %v961
    %v1031 = vpack.c.b16 %v965, %v962
    %v1032 = vpack.c.b16 %v969, %v966
    %v1033 = vpack.c.b16 %v970, %v967
    %v1034 = vpack.c.b16 %v971, %v968
    %v1035 = vpack.c.b16 %v975, %v972
    %v1036 = vpack.c.b16 %v976, %v973
    %v1037 = vpack.c.b16 %v977, %v974
    %v1038 = vpack.c.b16 %v981, %v978
    %v1039 = vpack.c.b16 %v982, %v979
    %v1040 = vpack.c.b16 %v983, %v980
    %v1041 = vpack.c.b16 %v987, %v984
    %v1042 = vpack.c.b16 %v988, %v985
    %v1043 = vpack.c.b16 %v989, %v986
    %v1044 = vpack.c.b16 %v993, %v990
    %v1045 = vpack.c.b16 %v994, %v991
    %v1046 = vpack.c.b16 %v995, %v992
    %v1047 = vpack.c.b16 %v999, %v996
    %v1048 = vpack.c.b16 %v1000, %v997
    %v1049 = vpack.c.b16 %v1001, %v998
    %v1050 = vpack.c.b16 %v1005, %v1002
    %v1051 = vpack.c.b16 %v1006, %v1003
    %v1052 = vpack.c.b16 %v1007, %v1004
    %v1053 = vpack.c.b16 %v1011, %v1008
    %v1054 = vpack.c.b16 %v1012, %v1009
    %v1055 = vpack.c.b16 %v1013, %v1010
    %v1056 = vpack.c.b16 %v1017, %v1014
    %v1057 = vpack.c.b16 %v1018, %v1015
    %v1058 = vpack.c.b16 %v1019, %v1016
    %v1059 = vpack.c.b16 %v1023, %v1020
    %v1060 = vpack.c.b16 %v1024, %v1021
    %v1061 = vpack.c.b16 %v1025, %v1022
    %vm1098 = vcmask 523264
    %v1100 = vsel %vm1098, %v840, 0
    %1102 = vmatprep.subr.bf16.mxu0 %v1027
    %1103 = vmatpush1.bf16.msra.mxu0 %v1026
    %1104 = vmatprep.subr.bf16.mxu0 %v1030
    %1105 = vmatpush1.bf16.msra.mxu0 %v1029
    %1106 = vmatprep.subr.bf16.mxu0 %v1033
    %1107 = vmatpush1.bf16.msra.mxu0 %v1032
    %1108 = vmatprep.subr.bf16.mxu0 %v1036
    %1109 = vmatpush1.bf16.msra.mxu0 %v1035
    %1110 = vmatprep.subr.bf16.mxu0 %v1039
    %1111 = vmatpush1.bf16.msra.mxu0 %v1038
    %1112 = vmatprep.subr.bf16.mxu0 %v1042
    %1113 = vmatpush1.bf16.msra.mxu0 %v1041
    %1114 = vmatprep.subr.bf16.mxu0 %v1045
    %1115 = vmatpush1.bf16.msra.mxu0 %v1044
    %1116 = vmatprep.subr.bf16.mxu0 %v1048
    %1117 = vmatpush1.bf16.msra.mxu0 %v1047
    %1118 = vmatprep.subr.bf16.mxu0 %v1051
    %1119 = vmatpush1.bf16.msra.mxu0 %v1050
    %1120 = vmatprep.subr.bf16.mxu0 %v1054
    %1121 = vmatpush1.bf16.msra.mxu0 %v1053
    %1122 = vmatprep.subr.bf16.mxu0 %v1057
    %1123 = vmatpush1.bf16.msra.mxu0 %v1056
    %1124 = vmatprep.subr.bf16.mxu0 %v1060
    %1125 = vmatpush1.bf16.msra.mxu0 %v1059
    %1126 = vmatprep.subr.bf16.mxu0 0
    %1127 = vmatpush1.bf16.msra.mxu0 0
    %1128 = vmatprep.subr.bf16.mxu0 0
    %1129 = vmatpush1.bf16.msra.mxu0 0
    %1130 = vmatprep.subr.bf16.mxu0 0
    %1131 = vmatpush1.bf16.msra.mxu0 0
    %1132 = vmatprep.subr.bf16.mxu0 0
    %1133 = vmatpush1.bf16.msra.mxu0 0
    %1134 = vmatprep.mubr.bf16.mxu0 %v1100
    %1135 = vmatmul.mubr.bf16.gmra.mrb[0].mxu0 %v839
    %v1136 = vpop.f32.mrb[0].mxu0
    %v1137 = vadd.f32 %v894, %v1136
    %v1138 = vpop.f32.mrb[0].mxu0
    %v1139 = vadd.f32 %v898, %v1138
    %v1140 = vpop.f32.mrb[0].mxu0
    %v1141 = vpop.f32.mrb[0].mxu0
    %1142 = vdwg.mxu0
    %1143 = vmatprep.subr.bf16.mxu0 0
    %1144 = vmatpush1.bf16.msra.mxu0 %v1028
    %1145 = vmatprep.subr.bf16.mxu0 0
    %1146 = vmatpush1.bf16.msra.mxu0 %v1031
    %1147 = vmatprep.subr.bf16.mxu0 0
    %1148 = vmatpush1.bf16.msra.mxu0 %v1034
    %1149 = vmatprep.subr.bf16.mxu0 0
    %1150 = vmatpush1.bf16.msra.mxu0 %v1037
    %1151 = vmatprep.subr.bf16.mxu0 0
    %1152 = vmatpush1.bf16.msra.mxu0 %v1040
    %1153 = vmatprep.subr.bf16.mxu0 0
    %1154 = vmatpush1.bf16.msra.mxu0 %v1043
    %1155 = vmatprep.subr.bf16.mxu0 0
    %1156 = vmatpush1.bf16.msra.mxu0 %v1046
    %1157 = vmatprep.subr.bf16.mxu0 0
    %1158 = vmatpush1.bf16.msra.mxu0 %v1049
    %1159 = vmatprep.subr.bf16.mxu0 0
    %1160 = vmatpush1.bf16.msra.mxu0 %v1052
    %1161 = vmatprep.subr.bf16.mxu0 0
    %1162 = vmatpush1.bf16.msra.mxu0 %v1055
    %1163 = vmatprep.subr.bf16.mxu0 0
    %1164 = vmatpush1.bf16.msra.mxu0 %v1058
    %1165 = vmatprep.subr.bf16.mxu0 0
    %1166 = vmatpush1.bf16.msra.mxu0 %v1061
    %1167 = vmatprep.subr.bf16.mxu0 0
    %1168 = vmatpush1.bf16.msra.mxu0 0
    %1169 = vmatprep.subr.bf16.mxu0 0
    %1170 = vmatpush1.bf16.msra.mxu0 0
    %1171 = vmatprep.subr.bf16.mxu0 0
    %1172 = vmatpush1.bf16.msra.mxu0 0
    %1173 = vmatprep.subr.bf16.mxu0 0
    %1174 = vmatpush1.bf16.msra.mxu0 0
    %1175 = vmatprep.mubr.bf16.mxu0 %v1100
    %1176 = vmatmul.mubr.bf16.gmra.mrb[0].mxu0 %v839
    %v1177 = vpop.f32.mrb[0].mxu0
    %v1178 = vadd.f32 %v902, %v1177
    %v1179 = vpop.f32.mrb[0].mxu0
    %v1180 = vpop.f32.mrb[0].mxu0
    %v1181 = vpop.f32.mrb[0].mxu0
    %1182 = vdwg.mxu0
    %v1183 = vmax.f32 %v1137, 0.0
    %v1184 = vmax.f32 %v1139, 0.0
    %v1185 = vmax.f32 %v1178, 0.0
    %v1186 = vpack.c.bf16 %v1183, %v1183
    %v1187 = vpack.c.bf16 %v1184, %v1184
    %v1188 = vpack.c.bf16 %v1185, %v1185
    %v1189 = vld [vmem:[%s14] sm:$0xf]
    %v1190 = vld [vmem:[%s14 + $0x4] sm:$0xf]
    %v1191 = vld [vmem:[%s14 + $0x8] sm:$0xf]
    %v1192 = vld [vmem:[%s14 + $0xc] sm:$0xf]
    %v1193 = vld [vmem:[%s14 + $0x10] sm:$0xf]
    %v1194 = vld [vmem:[%s14 + $0x14] sm:$0xf]
    %v1195 = vld [vmem:[%s14 + $0x18] sm:$0xf]
    %v1196 = vld [vmem:[%s14 + $0x1c] sm:$0xf]
    %v1197 = vld [vmem:[%s14 + $0x20] sm:$0xf]
    %v1198 = vld [vmem:[%s14 + $0x24] sm:$0xf]
    %v1199 = vld [vmem:[%s14 + $0x28] sm:$0xf]
    %v1200 = vld [vmem:[%s14 + $0x2c] sm:$0xf]
    %v1201 = vld [vmem:[%s14 + $0x30] sm:$0xf]
    %v1202 = vld [vmem:[%s14 + $0x34] sm:$0xf]
    %v1203 = vld [vmem:[%s14 + $0x38] sm:$0xf]
    %v1204 = vld [vmem:[%s14 + $0x3c] sm:$0xf]
    %v1205 = vld [vmem:[%s14 + $0x40] sm:$0xf]
    %v1206 = vld [vmem:[%s14 + $0x44] sm:$0xf]
    %v1207 = vld [vmem:[%s14 + $0x48] sm:$0xf]
    %v1208 = vld [vmem:[%s14 + $0x4c] sm:$0xf]
    %v1209 = vld [vmem:[%s14 + $0x50] sm:$0xf]
    %v1210 = vld [vmem:[%s14 + $0x54] sm:$0xf]
    %v1211 = vld [vmem:[%s14 + $0x58] sm:$0xf]
    %v1212 = vld [vmem:[%s14 + $0x5c] sm:$0xf]
    %v1213 = vld [vmem:[%s14 + $0x60] sm:$0xf]
    %v1214 = vld [vmem:[%s14 + $0x64] sm:$0xf]
    %v1215 = vld [vmem:[%s14 + $0x68] sm:$0xf]
    %v1216 = vld [vmem:[%s14 + $0x6c] sm:$0xf]
    %v1217 = vld [vmem:[%s14 + $0x70] sm:$0xf]
    %v1218 = vld [vmem:[%s14 + $0x74] sm:$0xf]
    %v1219 = vld [vmem:[%s14 + $0x78] sm:$0xf]
    %v1220 = vld [vmem:[%s14 + $0x7c] sm:$0xf]
    %v1221 = vld [vmem:[%s14 + $0x80] sm:$0xf]
    %v1222 = vld [vmem:[%s14 + $0x84] sm:$0xf]
    %v1223 = vld [vmem:[%s14 + $0x88] sm:$0xf]
    %v1224 = vld [vmem:[%s14 + $0x8c] sm:$0xf]
    %v1225 = vld [vmem:[%s14 + $0x90] sm:$0xf]
    %v1226 = vld [vmem:[%s14 + $0x94] sm:$0xf]
    %v1227 = vld [vmem:[%s14 + $0x98] sm:$0xf]
    %v1228 = vld [vmem:[%s14 + $0x9c] sm:$0xf]
    %v1229 = vld [vmem:[%s14 + $0xa0] sm:$0xf]
    %v1230 = vld [vmem:[%s14 + $0xa4] sm:$0xf]
    %v1231 = vld [vmem:[%s14 + $0xa8] sm:$0xf]
    %v1232 = vld [vmem:[%s14 + $0xac] sm:$0xf]
    %v1233 = vld [vmem:[%s14 + $0xb0] sm:$0xf]
    %v1234 = vld [vmem:[%s14 + $0xb4] sm:$0xf]
    %v1235 = vld [vmem:[%s14 + $0xb8] sm:$0xf]
    %v1236 = vld [vmem:[%s14 + $0xbc] sm:$0xf]
    %v1285 = vunpack.c.l.b16 %v1189
    %v1286 = vunpack.c.l.b16 %v1190
    %v1287 = vunpack.c.l.b16 %v1191
    %v1288 = vunpack.c.l.b16 %v1192
    %v1289 = vunpack.c.l.b16 %v1193
    %v1290 = vunpack.c.l.b16 %v1194
    %v1291 = vunpack.c.l.b16 %v1195
    %v1292 = vunpack.c.l.b16 %v1196
    %v1293 = vunpack.c.l.b16 %v1197
    %v1294 = vunpack.c.l.b16 %v1198
    %v1295 = vunpack.c.l.b16 %v1199
    %v1296 = vunpack.c.l.b16 %v1200
    %v1297 = vunpack.c.l.b16 %v1201
    %v1298 = vunpack.c.l.b16 %v1202
    %v1299 = vunpack.c.l.b16 %v1203
    %v1300 = vunpack.c.l.b16 %v1204
    %v1301 = vunpack.c.l.b16 %v1205
    %v1302 = vunpack.c.l.b16 %v1206
    %v1303 = vunpack.c.l.b16 %v1207
    %v1304 = vunpack.c.l.b16 %v1208
    %v1305 = vunpack.c.l.b16 %v1209
    %v1306 = vunpack.c.l.b16 %v1210
    %v1307 = vunpack.c.l.b16 %v1211
    %v1308 = vunpack.c.l.b16 %v1212
    %v1309 = vunpack.c.l.b16 %v1213
    %v1310 = vunpack.c.l.b16 %v1214
    %v1311 = vunpack.c.l.b16 %v1215
    %v1312 = vunpack.c.l.b16 %v1216
    %v1313 = vunpack.c.l.b16 %v1217
    %v1314 = vunpack.c.l.b16 %v1218
    %v1315 = vunpack.c.l.b16 %v1219
    %v1316 = vunpack.c.l.b16 %v1220
    %v1317 = vunpack.c.l.b16 %v1221
    %v1318 = vunpack.c.l.b16 %v1222
    %v1319 = vunpack.c.l.b16 %v1223
    %v1320 = vunpack.c.l.b16 %v1224
    %v1321 = vunpack.c.l.b16 %v1225
    %v1322 = vunpack.c.l.b16 %v1226
    %v1323 = vunpack.c.l.b16 %v1227
    %v1324 = vunpack.c.l.b16 %v1228
    %v1325 = vunpack.c.l.b16 %v1229
    %v1326 = vunpack.c.l.b16 %v1230
    %v1327 = vunpack.c.l.b16 %v1231
    %v1328 = vunpack.c.l.b16 %v1232
    %v1329 = vunpack.c.l.b16 %v1233
    %v1330 = vunpack.c.l.b16 %v1234
    %v1331 = vunpack.c.l.b16 %v1235
    %v1332 = vunpack.c.l.b16 %v1236
    %v1333 = vpack.c.b16 %v1286, %v1285
    %v1334 = vpack.c.b16 %v1288, %v1287
    %v1335 = vpack.c.b16 %v1290, %v1289
    %v1336 = vpack.c.b16 %v1292, %v1291
    %v1337 = vpack.c.b16 %v1294, %v1293
    %v1338 = vpack.c.b16 %v1296, %v1295
    %v1339 = vpack.c.b16 %v1298, %v1297
    %v1340 = vpack.c.b16 %v1300, %v1299
    %v1341 = vpack.c.b16 %v1302, %v1301
    %v1342 = vpack.c.b16 %v1304, %v1303
    %v1343 = vpack.c.b16 %v1306, %v1305
    %v1344 = vpack.c.b16 %v1308, %v1307
    %v1345 = vpack.c.b16 %v1310, %v1309
    %v1346 = vpack.c.b16 %v1312, %v1311
    %v1347 = vpack.c.b16 %v1314, %v1313
    %v1348 = vpack.c.b16 %v1316, %v1315
    %v1349 = vpack.c.b16 %v1318, %v1317
    %v1350 = vpack.c.b16 %v1320, %v1319
    %v1351 = vpack.c.b16 %v1322, %v1321
    %v1352 = vpack.c.b16 %v1324, %v1323
    %v1353 = vpack.c.b16 %v1326, %v1325
    %v1354 = vpack.c.b16 %v1328, %v1327
    %v1355 = vpack.c.b16 %v1330, %v1329
    %v1356 = vpack.c.b16 %v1332, %v1331
    %1381 = vmatprep.subr.bf16.mxu0 0
    %1382 = vmatpush1.bf16.msra.mxu0 %v1333
    %1383 = vmatprep.subr.bf16.mxu0 0
    %1384 = vmatpush1.bf16.msra.mxu0 %v1334
    %1385 = vmatprep.subr.bf16.mxu0 0
    %1386 = vmatpush1.bf16.msra.mxu0 %v1335
    %1387 = vmatprep.subr.bf16.mxu0 0
    %1388 = vmatpush1.bf16.msra.mxu0 %v1336
    %1389 = vmatprep.subr.bf16.mxu0 0
    %1390 = vmatpush1.bf16.msra.mxu0 %v1337
    %1391 = vmatprep.subr.bf16.mxu0 0
    %1392 = vmatpush1.bf16.msra.mxu0 %v1338
    %1393 = vmatprep.subr.bf16.mxu0 0
    %1394 = vmatpush1.bf16.msra.mxu0 %v1339
    %1395 = vmatprep.subr.bf16.mxu0 0
    %1396 = vmatpush1.bf16.msra.mxu0 %v1340
    %1397 = vmatprep.subr.bf16.mxu0 0
    %1398 = vmatpush1.bf16.msra.mxu0 %v1341
    %1399 = vmatprep.subr.bf16.mxu0 0
    %1400 = vmatpush1.bf16.msra.mxu0 %v1342
    %1401 = vmatprep.subr.bf16.mxu0 0
    %1402 = vmatpush1.bf16.msra.mxu0 %v1343
    %1403 = vmatprep.subr.bf16.mxu0 0
    %1404 = vmatpush1.bf16.msra.mxu0 %v1344
    %1405 = vmatprep.subr.bf16.mxu0 0
    %1406 = vmatpush1.bf16.msra.mxu0 %v1345
    %1407 = vmatprep.subr.bf16.mxu0 0
    %1408 = vmatpush1.bf16.msra.mxu0 %v1346
    %1409 = vmatprep.subr.bf16.mxu0 0
    %1410 = vmatpush1.bf16.msra.mxu0 %v1347
    %1411 = vmatprep.subr.bf16.mxu0 0
    %1412 = vmatpush1.bf16.msra.mxu0 %v1348
    %1413 = vmatprep.mubr.bf16.mxu0 %v1187
    %1414 = vmatmul.mubr.bf16.gmra.mrb[0].mxu0 %v1186
    %v1415 = vpop.f32.mrb[0].mxu0
    %v1416 = vadd.f32 0.0, %v1415
    %v1417 = vpop.f32.mrb[0].mxu0
    %v1418 = vpop.f32.mrb[0].mxu0
    %v1419 = vpop.f32.mrb[0].mxu0
    %1420 = vdwg.mxu0
    %1421 = vmatprep.subr.bf16.mxu0 0
    %1422 = vmatpush1.bf16.msra.mxu0 %v1349
    %1423 = vmatprep.subr.bf16.mxu0 0
    %1424 = vmatpush1.bf16.msra.mxu0 %v1350
    %1425 = vmatprep.subr.bf16.mxu0 0
    %1426 = vmatpush1.bf16.msra.mxu0 %v1351
    %1427 = vmatprep.subr.bf16.mxu0 0
    %1428 = vmatpush1.bf16.msra.mxu0 %v1352
    %1429 = vmatprep.subr.bf16.mxu0 0
    %1430 = vmatpush1.bf16.msra.mxu0 %v1353
    %1431 = vmatprep.subr.bf16.mxu0 0
    %1432 = vmatpush1.bf16.msra.mxu0 %v1354
    %1433 = vmatprep.subr.bf16.mxu0 0
    %1434 = vmatpush1.bf16.msra.mxu0 %v1355
    %1435 = vmatprep.subr.bf16.mxu0 0
    %1436 = vmatpush1.bf16.msra.mxu0 %v1356
    %1437 = vmatprep.subr.bf16.mxu0 0
    %1438 = vmatpush1.bf16.msra.mxu0 0
    %1439 = vmatprep.subr.bf16.mxu0 0
    %1440 = vmatpush1.bf16.msra.mxu0 0
    %1441 = vmatprep.subr.bf16.mxu0 0
    %1442 = vmatpush1.bf16.msra.mxu0 0
    %1443 = vmatprep.subr.bf16.mxu0 0
    %1444 = vmatpush1.bf16.msra.mxu0 0
    %1445 = vmatprep.subr.bf16.mxu0 0
    %1446 = vmatpush1.bf16.msra.mxu0 0
    %1447 = vmatprep.subr.bf16.mxu0 0
    %1448 = vmatpush1.bf16.msra.mxu0 0
    %1449 = vmatprep.subr.bf16.mxu0 0
    %1450 = vmatpush1.bf16.msra.mxu0 0
    %1451 = vmatprep.subr.bf16.mxu0 0
    %1452 = vmatpush1.bf16.msra.mxu0 0
    %1453 = vmatprep.mubr.bf16.mxu0 0
    %1454 = vmatmul.mubr.bf16.gmra.mrb[0].mxu0 %v1188
    %v1455 = vpop.f32.mrb[0].mxu0
    %v1456 = vadd.f32 %v1416, %v1455
    %v1457 = vpop.f32.mrb[0].mxu0
    %v1458 = vpop.f32.mrb[0].mxu0
    %v1459 = vpop.f32.mrb[0].mxu0
    %1460 = vdwg.mxu0
    %v1461 = vld [vmem:[#allocation2] sm:$0x1]
    %v1463 = vlaneseq
    %v1464 = vshrl.u32 %v1463, 7
    %v1465 = vsub.s32 0, %v1464
    %v1466 = vrot.slane %v1461, %v1465
    %v1468 = vadd.f32 %v1456, %v1466
    %vm1469 = vcmask 7168
    %1470 = vst.msk [vmem:[%s16] sm:$0xff] %vm1469, %v1468
    // Predicated region
    $region94: #{tpu_custom_call.1} parent=1 // pred_check
      _
    $region95: #{tpu_custom_call.1} parent=1 // pred_check_branch
      %1472 = sbr.rel (0) target = $region97
    $region96: #{tpu_custom_call.1} parent=1 // pred_region
      _
    $region97: #{tpu_custom_call.1} parent=1 // pred_fallthru
      _
    // Predicated region
    $region98: #{tpu_custom_call.1} parent=1 // pred_check
      _
    $region99: #{tpu_custom_call.1} parent=1 // pred_check_branch
      %1474 = sbr.rel (0) target = $region101
    $region100: #{tpu_custom_call.1} parent=1 // pred_region
      _
    $region101: #{tpu_custom_call.1} parent=1 // pred_fallthru
      _
    %1475 = vsyncpa [#allocation4], 1
    %1476 = vsyncpa [#allocation6], 1
    %1477 = vsyncpa [#allocation9], 1
    %1478 = vsyncpa [#allocation12], 1

</llo_original>
